<compile_context>
chip_gen: v7x
topology: tpu7x:2x2x1
jax: 0.10.0
libtpu: 0.0.40
codegen_flags: <defaults>
</compile_context>

<pallas_src>
import functools

import jax
import jax.numpy as jnp
from jax.experimental import pallas as pl
from jax.experimental.pallas import tpu as pltpu

EPS = 1e-5
F32 = jnp.float32
ACT_DTYPE = jnp.bfloat16            # storage dtype for inter-layer activations
_VMEM_LIMIT = 48 * 1024 * 1024      # leave headroom vs v7x's 64 MiB physical VMEM


def _pick_row_tile(ho, wo):
    """Largest divisor of `ho` giving roughly <= 2048 output pixels per row tile."""
    target = max(1, 2048 // max(wo, 1))
    tr = 1
    for d in range(1, ho + 1):
        if ho % d == 0 and d <= target:
            tr = d
    return tr


# ------------------------------ Pallas kernels --------------------------------

def _make_conv_kernel(*, stride, tr, wo, hp, wp, cin, cout, cdown,
                      use_pre, use_prelu, res_mode):
    """Fused 3x3 conv (9 shifted MXU matmuls) + BN affine(s) + PReLU + residual.

    Ref order (must match conv3x3_block):
      conv input(s): 1 zero-padded NHWC image (stride 1) or 4 phase views (stride 2)
      w        : (9, cin, cout) bf16, post-BN scale folded into the columns
      [pre_s, pre_b] : (1, cin)  bn1 pre-affine (eval mode), applied in-kernel
      post_b   : (1, cout)       post-BN shift
      [alpha]  : (1, cout)       PReLU slope
      [res]                      identity residual tile            (res_mode=="identity")
      [res, wd, d_b]             subsampled x, 1x1 weights, shift   (res_mode=="down")
      out      : (tr, wo, cout)
    """
    n_in = 1 if stride == 1 else 4

    def kernel(*refs):
        i = 0
        conv_refs = refs[i:i + n_in]; i += n_in
        w_ref = refs[i]; i += 1
        if use_pre:
            pre_s_ref = refs[i]; pre_b_ref = refs[i + 1]; i += 2
        post_b_ref = refs[i]; i += 1
        if use_prelu:
            alpha_ref = refs[i]; i += 1
        if res_mode == "identity":
            res_ref = refs[i]; i += 1
        elif res_mode == "down":
            res_ref = refs[i]; wd_ref = refs[i + 1]; d_b_ref = refs[i + 2]; i += 3
        o_ref = refs[i]

        ro = pl.program_id(1)
        row0 = ro * tr
        acc = jnp.zeros((tr * wo, cout), F32)

        if stride == 1:
            xt = conv_refs[0][pl.ds(row0, tr + 2), :, :]           # (tr+2, wp, cin)
            if use_pre:
                # bn1 pre-affine; the zero padding must stay exactly zero,
                # so mask the border rows/cols of the padded image.
                rr = row0 + jax.lax.broadcasted_iota(jnp.int32, (tr + 2, wp), 0)
                cc = jax.lax.broadcasted_iota(jnp.int32, (tr + 2, wp), 1)
                interior = (rr > 0) & (rr < hp - 1) & (cc > 0) & (cc < wp - 1)
                xt = jnp.where(interior[:, :, None],
                               xt.astype(F32) * pre_s_ref[...] + pre_b_ref[...],
                               0.0)
            xt = xt.astype(jnp.bfloat16)
            for kh in range(3):
                for kw in range(3):
                    patch = xt[kh:kh + tr, kw:kw + wo, :].reshape(tr * wo, cin)
                    acc = acc + jnp.dot(patch, w_ref[3 * kh + kw],
                                        preferred_element_type=F32)
        else:
            # stride 2: conv_refs are the 4 phase views pad(x)[q::2, p::2],
            # so every tap is a contiguous slice (no strided in-kernel access).
            phases = [r[pl.ds(row0, tr + 1), :, :].astype(jnp.bfloat16)
                      for r in conv_refs]                          # (tr+1, wo+1, cin)
            for kh in range(3):
                for kw in range(3):
                    src = phases[2 * (kh % 2) + (kw % 2)]
                    patch = src[kh // 2:kh // 2 + tr,
                                kw // 2:kw // 2 + wo, :].reshape(tr * wo, cin)
                    acc = acc + jnp.dot(patch, w_ref[3 * kh + kw],
                                        preferred_element_type=F32)

        out = acc + post_b_ref[...]                                # BN shift (scale folded)
        if use_prelu:
            out = jnp.where(out >= 0.0, out, out * alpha_ref[...])
        if res_mode == "identity":
            out = out + res_ref[...].reshape(tr * wo, cout).astype(F32)
        elif res_mode == "down":
            xs = res_ref[...].reshape(tr * wo, cdown).astype(jnp.bfloat16)
            out = out + jnp.dot(xs, wd_ref[...], preferred_element_type=F32) \
                      + d_b_ref[...]
        o_ref[...] = out.reshape(tr, wo, cout).astype(o_ref.dtype)

    return kernel


def conv3x3_block(x, w9, post_shift, *, stride,
                  use_pre=False, pre_scale=None, pre_shift=None,
                  use_prelu=False, alpha=None,
                  res_mode="none", res=None, wd=None, d_shift=None,
                  out_dtype=ACT_DTYPE):
    """One fused pallas_call: 3x3 conv (+folded BN) [+bn1 pre-affine] [+PReLU]
    [+identity residual | +fused 1x1-downsample residual]."""
    N, H, W, Cin = x.shape
    Cout = w9.shape[-1]
    assert H % stride == 0 and W % stride == 0
    Ho, Wo = H // stride, W // stride
    tr = _pick_row_tile(Ho, Wo)
    grid = (N, Ho // tr)

    xp = jnp.pad(x, ((0, 0), (1, 1), (1, 1), (0, 0)))      # zero padding = 1

    inputs, in_specs = [], []
    if stride == 1:
        inputs.append(xp)
        in_specs.append(pl.BlockSpec((None, H + 2, W + 2, Cin),
                                     lambda n, r: (n, 0, 0, 0)))
    else:
        for q in range(2):
            for p in range(2):
                inputs.append(xp[:, q::2, p::2, :])
                in_specs.append(pl.BlockSpec((None, Ho + 1, Wo + 1, Cin),
                                             lambda n, r: (n, 0, 0, 0)))
    inputs.append(w9)
    in_specs.append(pl.BlockSpec((9, Cin, Cout), lambda n, r: (0, 0, 0)))
    if use_pre:
        inputs += [pre_scale.reshape(1, Cin), pre_shift.reshape(1, Cin)]
        in_specs += [pl.BlockSpec((1, Cin), lambda n, r: (0, 0)),
                     pl.BlockSpec((1, Cin), lambda n, r: (0, 0))]
    inputs.append(post_shift.reshape(1, Cout))
    in_specs.append(pl.BlockSpec((1, Cout), lambda n, r: (0, 0)))
    if use_prelu:
        inputs.append(alpha.reshape(1, Cout))
        in_specs.append(pl.BlockSpec((1, Cout), lambda n, r: (0, 0)))
    cdown = 0
    if res_mode == "identity":
        inputs.append(res)
        in_specs.append(pl.BlockSpec((None, tr, Wo, Cout), lambda n, r: (n, r, 0, 0)))
    elif res_mode == "down":
        cdown = res.shape[-1]
        inputs += [res, wd, d_shift.reshape(1, Cout)]
        in_specs += [pl.BlockSpec((None, tr, Wo, cdown), lambda n, r: (n, r, 0, 0)),
                     pl.BlockSpec((cdown, Cout), lambda n, r: (0, 0)),
                     pl.BlockSpec((1, Cout), lambda n, r: (0, 0))]

    kernel = _make_conv_kernel(stride=stride, tr=tr, wo=Wo, hp=H + 2, wp=W + 2,
                               cin=Cin, cout=Cout, cdown=cdown,
                               use_pre=use_pre, use_prelu=use_prelu, res_mode=res_mode)
    return pl.pallas_call(
        kernel,
        out_shape=jax.ShapeDtypeStruct((N, Ho, Wo, Cout), out_dtype),
        grid=grid,
        in_specs=in_specs,
        out_specs=pl.BlockSpec((None, tr, Wo, Cout), lambda n, r: (n, r, 0, 0)),
        compiler_params=pltpu.CompilerParams(
            dimension_semantics=("parallel", "parallel"),
            vmem_limit_bytes=_VMEM_LIMIT),
    )(*inputs)


def _head_kernel(x_ref, s2_ref, b2_ref, sf_ref, bf_ref, o_ref, *, inv_hw):
    hh, ww, cc = x_ref.shape
    v = x_ref[...].astype(F32) * s2_ref[...] + b2_ref[...]           # bn2 affine
    m = jnp.sum(v.reshape(hh * ww, cc), axis=0, keepdims=True) * inv_hw   # avgpool
    o_ref[...] = (m * sf_ref[...] + bf_ref[...]).astype(o_ref.dtype)      # features BN


def head(x, bn2_scale, bn2_shift, feat_scale, feat_shift):
    """bn2 -> adaptive avgpool(1,1) -> squeeze -> dropout(p=0) -> features BN."""
    N, H, W, C = x.shape
    return pl.pallas_call(
        functools.partial(_head_kernel, inv_hw=1.0 / float(H * W)),
        out_shape=jax.ShapeDtypeStruct((N, C), F32),
        grid=(N,),
        in_specs=[
            pl.BlockSpec((None, H, W, C), lambda n: (n, 0, 0, 0)),
            pl.BlockSpec((1, C), lambda n: (0, 0)),
            pl.BlockSpec((1, C), lambda n: (0, 0)),
            pl.BlockSpec((1, C), lambda n: (0, 0)),
            pl.BlockSpec((1, C), lambda n: (0, 0)),
        ],
        out_specs=pl.BlockSpec((1, C), lambda n: (n, 0)),
        compiler_params=pltpu.CompilerParams(
            dimension_semantics=("parallel",),
            vmem_limit_bytes=_VMEM_LIMIT),
    )(x, bn2_scale.reshape(1, C), bn2_shift.reshape(1, C),
      feat_scale.reshape(1, C), feat_shift.reshape(1, C))


# -------------------------------- parameters ----------------------------------

def _bn_affine(c):
    # PyTorch init: gamma=1, beta=0, running_mean=0, running_var=1 (eval-mode fold)
    gamma = jnp.ones((c,), F32)
    beta = jnp.zeros((c,), F32)
    mean = jnp.zeros((c,), F32)
    var = jnp.ones((c,), F32)
    scale = gamma / jnp.sqrt(var + EPS)
    shift = beta - mean * scale
    return scale, shift


def _fold3x3(w_hwio, out_scale):
    """(3,3,Cin,Cout) f32 -> (9,Cin,Cout) bf16 with the post-BN scale folded in."""
    kh, kw, ci, co = w_hwio.shape
    w = w_hwio * out_scale.reshape(1, 1, 1, co)
    return w.reshape(kh * kw, ci, co).astype(jnp.bfloat16)


def init_params(key, layers=(1, 1, 1, 1), num_features=512):
    params = {}
    key, k = jax.random.split(key)
    w_stem = 0.1 * jax.random.normal(k, (3, 3, 3, 64), F32)     # conv init N(0, 0.1)
    s_bn, b_bn = _bn_affine(64)                                 # model-level bn1
    params["w_stem"] = _fold3x3(w_stem, s_bn)
    params["b_stem"] = b_bn
    params["alpha_stem"] = jnp.full((64,), 0.25, F32)           # nn.PReLU default

    inplanes = 64
    blocks = []
    for planes, nblocks in zip((64, 128, 256, 512), layers):
        for bi in range(nblocks):
            stride = 2 if bi == 0 else 1
            downsample = (stride != 1) or (inplanes != planes)
            key, k1, k2, k3 = jax.random.split(key, 4)
            s1, b1 = _bn_affine(inplanes)   # bn1 (pre-activation, kept in-kernel)
            s2, b2 = _bn_affine(planes)     # bn2 (scale folded into w1 columns)
            s3, b3 = _bn_affine(planes)     # bn3 (scale folded into w2 columns)
            bp = {
                "stride": stride,
                "pre_scale": s1, "pre_shift": b1,
                "w1": _fold3x3(0.1 * jax.random.normal(k1, (3, 3, inplanes, planes), F32), s2),
                "b2": b2,
                "alpha": jnp.full((planes,), 0.25, F32),
                "w2": _fold3x3(0.1 * jax.random.normal(k2, (3, 3, planes, planes), F32), s3),
                "b3": b3,
            }
            if downsample:
                sd, bd = _bn_affine(planes)
                wdm = 0.1 * jax.random.normal(k3, (inplanes, planes), F32)
                bp["wd"] = (wdm * sd.reshape(1, planes)).astype(jnp.bfloat16)
                bp["bd"] = bd
            blocks.append(bp)
            inplanes = planes
    params["blocks"] = blocks
    params["bn2"] = _bn_affine(512)
    params["features"] = _bn_affine(num_features)   # features.weight = 1.0, bias = 0
    return params


# --------------------------------- forward ------------------------------------

def iblock_forward(x, bp):
    """IBasicBlock: bn1 -> conv1 -> bn2 -> prelu -> conv2 -> bn3 (+downsample) + id,
    as two fused Pallas conv kernels."""
    s = bp["stride"]
    h = conv3x3_block(x, bp["w1"], bp["b2"], stride=1,
                      use_pre=True, pre_scale=bp["pre_scale"], pre_shift=bp["pre_shift"],
                      use_prelu=True, alpha=bp["alpha"])
    if "wd" in bp:
        # 1x1 stride-s downsample + bnd + residual add fused into the conv2 kernel.
        x_sub = x[:, ::s, ::s, :] if s > 1 else x
        return conv3x3_block(h, bp["w2"], bp["b3"], stride=s,
                             res_mode="down", res=x_sub, wd=bp["wd"], d_shift=bp["bd"])
    return conv3x3_block(h, bp["w2"], bp["b3"], stride=s, res_mode="identity", res=x)


def iresnet_forward(x_nchw, params):
    # accept NCHW (PyTorch convention), compute in NHWC
    x = jnp.transpose(x_nchw, (0, 2, 3, 1)).astype(F32)
    # stem: conv1 + bn1 (folded) + prelu in one kernel
    h = conv3x3_block(x, params["w_stem"], params["b_stem"], stride=1,
                      use_prelu=True, alpha=params["alpha_stem"])
    for bp in params["blocks"]:
        h = iblock_forward(h, bp)
    s2, b2 = params["bn2"]
    sf, bf = params["features"]
    return head(h, s2, b2, sf, bf)


if __name__ == "__main__":
    key = jax.random.PRNGKey(0)
    kx, kp = jax.random.split(key)
    # small input: batch=2, 3 channels, 16x16 spatial (NCHW like PyTorch)
    x = jax.random.normal(kx, (2, 3, 16, 16), F32)
    params = init_params(kp, layers=(1, 1, 1, 1), num_features=512)

    emb = iresnet_forward(x, params)
    emb = jax.block_until_ready(emb)
    assert emb.shape == (2, 512), emb.shape
    assert bool(jnp.all(jnp.isfinite(emb)))
    print("KERNEL_OK")
</pallas_src>

<mosaic_0001>
module attributes {stable_mosaic.version = 11 : i64} {
  func.func @kernel(%arg0: i32, %arg1: i32, %arg2: memref<1x18x18x3xf32, #tpu.memory_space<vmem>>, %arg3: memref<9x3x64xbf16, #tpu.memory_space<vmem>>, %arg4: memref<1x64xf32, #tpu.memory_space<vmem>>, %arg5: memref<1x64xf32, #tpu.memory_space<vmem>>, %arg6: memref<1x16x16x64xbf16, #tpu.memory_space<vmem>>) attributes {dimension_semantics = [#tpu.dimension_semantics<parallel>, #tpu.dimension_semantics<parallel>], iteration_bounds = array<i64: 2, 1>, scalar_prefetch = 0 : i64, scratch_operands = 0 : i64, tpu.core_type = #tpu.core_type<tc>, window_params = [{transform_indices = @transform_0, window_bounds = array<i64: 1, 18, 18, 3>}, {pipeline_mode = #tpu.pipeline_mode<synchronous>, transform_indices = @transform_1, window_bounds = array<i64: 9, 3, 64>}, {pipeline_mode = #tpu.pipeline_mode<synchronous>, transform_indices = @transform_2, window_bounds = array<i64: 1, 64>}, {pipeline_mode = #tpu.pipeline_mode<synchronous>, transform_indices = @transform_3, window_bounds = array<i64: 1, 64>}, {transform_indices = @transform_4, window_bounds = array<i64: 1, 16, 16, 64>}]} {
    %c16_i32 = arith.constant 16 : i32
    %0 = arith.muli %arg1, %c16_i32 : i32
    %cst = arith.constant 0.000000e+00 : f32
    %1 = vector.broadcast %cst : f32 to vector<256x64xf32>
    %c0 = arith.constant 0 : index
    %2 = arith.index_cast %0 : i32 to index
    %c0_0 = arith.constant 0 : index
    %c0_1 = arith.constant 0 : index
    %3 = vector.load %arg2[%c0, %2, %c0_0, %c0_1] : memref<1x18x18x3xf32, #tpu.memory_space<vmem>>, vector<1x18x18x3xf32>
    %4 = vector.shape_cast %3 : vector<1x18x18x3xf32> to vector<18x18x3xf32>
    %5 = arith.truncf %4 : vector<18x18x3xf32> to vector<18x18x3xbf16>
    %6 = vector.extract_strided_slice %5 {offsets = [0, 0, 0], sizes = [16, 16, 3], strides = [1, 1, 1]} : vector<18x18x3xbf16> to vector<16x16x3xbf16>
    %7 = vector.shape_cast %6 : vector<16x16x3xbf16> to vector<256x3xbf16>
    %c0_2 = arith.constant 0 : index
    %c0_3 = arith.constant 0 : index
    %c0_4 = arith.constant 0 : index
    %8 = vector.load %arg3[%c0_2, %c0_3, %c0_4] : memref<9x3x64xbf16, #tpu.memory_space<vmem>>, vector<1x3x64xbf16>
    %9 = vector.shape_cast %8 : vector<1x3x64xbf16> to vector<3x64xbf16>
    %cst_5 = arith.constant dense<0.000000e+00> : vector<256x64xf32>
    %10 = tpu.matmul %7, %9, %cst_5 {dimension_numbers = #tpu.dot_dimension_numbers<[1], [0], [0], [1], [0, 0, 1, 1], [], []>} : vector<256x3xbf16>, vector<3x64xbf16>, vector<256x64xf32> -> vector<256x64xf32>
    %11 = arith.addf %1, %10 : vector<256x64xf32>
    %12 = vector.extract_strided_slice %5 {offsets = [0, 1, 0], sizes = [16, 16, 3], strides = [1, 1, 1]} : vector<18x18x3xbf16> to vector<16x16x3xbf16>
    %13 = vector.shape_cast %12 : vector<16x16x3xbf16> to vector<256x3xbf16>
    %c1 = arith.constant 1 : index
    %c0_6 = arith.constant 0 : index
    %c0_7 = arith.constant 0 : index
    %14 = vector.load %arg3[%c1, %c0_6, %c0_7] : memref<9x3x64xbf16, #tpu.memory_space<vmem>>, vector<1x3x64xbf16>
    %15 = vector.shape_cast %14 : vector<1x3x64xbf16> to vector<3x64xbf16>
    %cst_8 = arith.constant dense<0.000000e+00> : vector<256x64xf32>
    %16 = tpu.matmul %13, %15, %cst_8 {dimension_numbers = #tpu.dot_dimension_numbers<[1], [0], [0], [1], [0, 0, 1, 1], [], []>} : vector<256x3xbf16>, vector<3x64xbf16>, vector<256x64xf32> -> vector<256x64xf32>
    %17 = arith.addf %11, %16 : vector<256x64xf32>
    %18 = vector.extract_strided_slice %5 {offsets = [0, 2, 0], sizes = [16, 16, 3], strides = [1, 1, 1]} : vector<18x18x3xbf16> to vector<16x16x3xbf16>
    %19 = vector.shape_cast %18 : vector<16x16x3xbf16> to vector<256x3xbf16>
    %c2 = arith.constant 2 : index
    %c0_9 = arith.constant 0 : index
    %c0_10 = arith.constant 0 : index
    %20 = vector.load %arg3[%c2, %c0_9, %c0_10] : memref<9x3x64xbf16, #tpu.memory_space<vmem>>, vector<1x3x64xbf16>
    %21 = vector.shape_cast %20 : vector<1x3x64xbf16> to vector<3x64xbf16>
    %cst_11 = arith.constant dense<0.000000e+00> : vector<256x64xf32>
    %22 = tpu.matmul %19, %21, %cst_11 {dimension_numbers = #tpu.dot_dimension_numbers<[1], [0], [0], [1], [0, 0, 1, 1], [], []>} : vector<256x3xbf16>, vector<3x64xbf16>, vector<256x64xf32> -> vector<256x64xf32>
    %23 = arith.addf %17, %22 : vector<256x64xf32>
    %24 = vector.extract_strided_slice %5 {offsets = [1, 0, 0], sizes = [16, 16, 3], strides = [1, 1, 1]} : vector<18x18x3xbf16> to vector<16x16x3xbf16>
    %25 = vector.shape_cast %24 : vector<16x16x3xbf16> to vector<256x3xbf16>
    %c3 = arith.constant 3 : index
    %c0_12 = arith.constant 0 : index
    %c0_13 = arith.constant 0 : index
    %26 = vector.load %arg3[%c3, %c0_12, %c0_13] : memref<9x3x64xbf16, #tpu.memory_space<vmem>>, vector<1x3x64xbf16>
    %27 = vector.shape_cast %26 : vector<1x3x64xbf16> to vector<3x64xbf16>
    %cst_14 = arith.constant dense<0.000000e+00> : vector<256x64xf32>
    %28 = tpu.matmul %25, %27, %cst_14 {dimension_numbers = #tpu.dot_dimension_numbers<[1], [0], [0], [1], [0, 0, 1, 1], [], []>} : vector<256x3xbf16>, vector<3x64xbf16>, vector<256x64xf32> -> vector<256x64xf32>
    %29 = arith.addf %23, %28 : vector<256x64xf32>
    %30 = vector.extract_strided_slice %5 {offsets = [1, 1, 0], sizes = [16, 16, 3], strides = [1, 1, 1]} : vector<18x18x3xbf16> to vector<16x16x3xbf16>
    %31 = vector.shape_cast %30 : vector<16x16x3xbf16> to vector<256x3xbf16>
    %c4 = arith.constant 4 : index
    %c0_15 = arith.constant 0 : index
    %c0_16 = arith.constant 0 : index
    %32 = vector.load %arg3[%c4, %c0_15, %c0_16] : memref<9x3x64xbf16, #tpu.memory_space<vmem>>, vector<1x3x64xbf16>
    %33 = vector.shape_cast %32 : vector<1x3x64xbf16> to vector<3x64xbf16>
    %cst_17 = arith.constant dense<0.000000e+00> : vector<256x64xf32>
    %34 = tpu.matmul %31, %33, %cst_17 {dimension_numbers = #tpu.dot_dimension_numbers<[1], [0], [0], [1], [0, 0, 1, 1], [], []>} : vector<256x3xbf16>, vector<3x64xbf16>, vector<256x64xf32> -> vector<256x64xf32>
    %35 = arith.addf %29, %34 : vector<256x64xf32>
    %36 = vector.extract_strided_slice %5 {offsets = [1, 2, 0], sizes = [16, 16, 3], strides = [1, 1, 1]} : vector<18x18x3xbf16> to vector<16x16x3xbf16>
    %37 = vector.shape_cast %36 : vector<16x16x3xbf16> to vector<256x3xbf16>
    %c5 = arith.constant 5 : index
    %c0_18 = arith.constant 0 : index
    %c0_19 = arith.constant 0 : index
    %38 = vector.load %arg3[%c5, %c0_18, %c0_19] : memref<9x3x64xbf16, #tpu.memory_space<vmem>>, vector<1x3x64xbf16>
    %39 = vector.shape_cast %38 : vector<1x3x64xbf16> to vector<3x64xbf16>
    %cst_20 = arith.constant dense<0.000000e+00> : vector<256x64xf32>
    %40 = tpu.matmul %37, %39, %cst_20 {dimension_numbers = #tpu.dot_dimension_numbers<[1], [0], [0], [1], [0, 0, 1, 1], [], []>} : vector<256x3xbf16>, vector<3x64xbf16>, vector<256x64xf32> -> vector<256x64xf32>
    %41 = arith.addf %35, %40 : vector<256x64xf32>
    %42 = vector.extract_strided_slice %5 {offsets = [2, 0, 0], sizes = [16, 16, 3], strides = [1, 1, 1]} : vector<18x18x3xbf16> to vector<16x16x3xbf16>
    %43 = vector.shape_cast %42 : vector<16x16x3xbf16> to vector<256x3xbf16>
    %c6 = arith.constant 6 : index
    %c0_21 = arith.constant 0 : index
    %c0_22 = arith.constant 0 : index
    %44 = vector.load %arg3[%c6, %c0_21, %c0_22] : memref<9x3x64xbf16, #tpu.memory_space<vmem>>, vector<1x3x64xbf16>
    %45 = vector.shape_cast %44 : vector<1x3x64xbf16> to vector<3x64xbf16>
    %cst_23 = arith.constant dense<0.000000e+00> : vector<256x64xf32>
    %46 = tpu.matmul %43, %45, %cst_23 {dimension_numbers = #tpu.dot_dimension_numbers<[1], [0], [0], [1], [0, 0, 1, 1], [], []>} : vector<256x3xbf16>, vector<3x64xbf16>, vector<256x64xf32> -> vector<256x64xf32>
    %47 = arith.addf %41, %46 : vector<256x64xf32>
    %48 = vector.extract_strided_slice %5 {offsets = [2, 1, 0], sizes = [16, 16, 3], strides = [1, 1, 1]} : vector<18x18x3xbf16> to vector<16x16x3xbf16>
    %49 = vector.shape_cast %48 : vector<16x16x3xbf16> to vector<256x3xbf16>
    %c7 = arith.constant 7 : index
    %c0_24 = arith.constant 0 : index
    %c0_25 = arith.constant 0 : index
    %50 = vector.load %arg3[%c7, %c0_24, %c0_25] : memref<9x3x64xbf16, #tpu.memory_space<vmem>>, vector<1x3x64xbf16>
    %51 = vector.shape_cast %50 : vector<1x3x64xbf16> to vector<3x64xbf16>
    %cst_26 = arith.constant dense<0.000000e+00> : vector<256x64xf32>
    %52 = tpu.matmul %49, %51, %cst_26 {dimension_numbers = #tpu.dot_dimension_numbers<[1], [0], [0], [1], [0, 0, 1, 1], [], []>} : vector<256x3xbf16>, vector<3x64xbf16>, vector<256x64xf32> -> vector<256x64xf32>
    %53 = arith.addf %47, %52 : vector<256x64xf32>
    %54 = vector.extract_strided_slice %5 {offsets = [2, 2, 0], sizes = [16, 16, 3], strides = [1, 1, 1]} : vector<18x18x3xbf16> to vector<16x16x3xbf16>
    %55 = vector.shape_cast %54 : vector<16x16x3xbf16> to vector<256x3xbf16>
    %c8 = arith.constant 8 : index
    %c0_27 = arith.constant 0 : index
    %c0_28 = arith.constant 0 : index
    %56 = vector.load %arg3[%c8, %c0_27, %c0_28] : memref<9x3x64xbf16, #tpu.memory_space<vmem>>, vector<1x3x64xbf16>
    %57 = vector.shape_cast %56 : vector<1x3x64xbf16> to vector<3x64xbf16>
    %cst_29 = arith.constant dense<0.000000e+00> : vector<256x64xf32>
    %58 = tpu.matmul %55, %57, %cst_29 {dimension_numbers = #tpu.dot_dimension_numbers<[1], [0], [0], [1], [0, 0, 1, 1], [], []>} : vector<256x3xbf16>, vector<3x64xbf16>, vector<256x64xf32> -> vector<256x64xf32>
    %59 = arith.addf %53, %58 : vector<256x64xf32>
    %c0_30 = arith.constant 0 : index
    %c0_31 = arith.constant 0 : index
    %60 = vector.load %arg4[%c0_30, %c0_31] : memref<1x64xf32, #tpu.memory_space<vmem>>, vector<1x64xf32>
    %61 = vector.broadcast %60 : vector<1x64xf32> to vector<256x64xf32>
    %62 = arith.addf %59, %61 : vector<256x64xf32>
    %cst_32 = arith.constant 0.000000e+00 : f32
    %63 = vector.broadcast %cst_32 : f32 to vector<256x64xf32>
    %64 = arith.cmpf oge, %62, %63 : vector<256x64xf32>
    %c0_33 = arith.constant 0 : index
    %c0_34 = arith.constant 0 : index
    %65 = vector.load %arg5[%c0_33, %c0_34] : memref<1x64xf32, #tpu.memory_space<vmem>>, vector<1x64xf32>
    %66 = vector.broadcast %65 : vector<1x64xf32> to vector<256x64xf32>
    %67 = arith.mulf %62, %66 : vector<256x64xf32>
    %68 = arith.select %64, %62, %67 : vector<256x64xi1>, vector<256x64xf32>
    %69 = vector.shape_cast %68 : vector<256x64xf32> to vector<16x16x64xf32>
    %70 = arith.truncf %69 : vector<16x16x64xf32> to vector<16x16x64xbf16>
    %c0_35 = arith.constant 0 : index
    %c0_36 = arith.constant 0 : index
    %c0_37 = arith.constant 0 : index
    %c0_38 = arith.constant 0 : index
    %71 = vector.load %arg6[%c0_35, %c0_36, %c0_37, %c0_38] : memref<1x16x16x64xbf16, #tpu.memory_space<vmem>>, vector<1x16x16x64xbf16>
    %72 = vector.shape_cast %71 : vector<1x16x16x64xbf16> to vector<16x16x64xbf16>
    %73 = vector.shape_cast %70 : vector<16x16x64xbf16> to vector<1x16x16x64xbf16>
    tpu.vector_store %arg6[%c0_35, %c0_36, %c0_37, %c0_38], %73 {strides = array<i32>} : memref<1x16x16x64xbf16, #tpu.memory_space<vmem>>, vector<1x16x16x64xbf16>,
    return
  }
  func.func @transform_0(%arg0: i32, %arg1: i32) -> (i32, i32, i32, i32) {
    %c0_i32 = arith.constant 0 : i32
    %c0_i32_0 = arith.constant 0 : i32
    %c0_i32_1 = arith.constant 0 : i32
    %c0_i32_2 = arith.constant 0 : i32
    return %arg0, %c0_i32, %c0_i32_0, %c0_i32_1 : i32, i32, i32, i32
  }
  func.func @transform_1(%arg0: i32, %arg1: i32) -> (i32, i32, i32) {
    %c0_i32 = arith.constant 0 : i32
    %c0_i32_0 = arith.constant 0 : i32
    %c0_i32_1 = arith.constant 0 : i32
    %c0_i32_2 = arith.constant 0 : i32
    return %c0_i32, %c0_i32_0, %c0_i32_1 : i32, i32, i32
  }
  func.func @transform_2(%arg0: i32, %arg1: i32) -> (i32, i32) {
    %c0_i32 = arith.constant 0 : i32
    %c0_i32_0 = arith.constant 0 : i32
    %c0_i32_1 = arith.constant 0 : i32
    return %c0_i32, %c0_i32_0 : i32, i32
  }
  func.func @transform_3(%arg0: i32, %arg1: i32) -> (i32, i32) {
    %c0_i32 = arith.constant 0 : i32
    %c0_i32_0 = arith.constant 0 : i32
    %c0_i32_1 = arith.constant 0 : i32
    return %c0_i32, %c0_i32_0 : i32, i32
  }
  func.func @transform_4(%arg0: i32, %arg1: i32) -> (i32, i32, i32, i32) {
    %c0_i32 = arith.constant 0 : i32
    %c0_i32_0 = arith.constant 0 : i32
    %c0_i32_1 = arith.constant 0 : i32
    return %arg0, %arg1, %c0_i32, %c0_i32_0 : i32, i32, i32, i32
  }
}

</mosaic_0001>

<llo_original>
// kernel: tpu_custom_call.1
$region0: #{tpu_custom_call.1}
  #allocation0 [shape = 'u32[]', space=smem, size = 0x4, offset = 0x4, fixed_abs, tag = 'smem constant byte address 0x4 - core index']
  #allocation1 [shape = 'u32[144,128]{1,0:T(1,128)}', space=vmem, size = 0x12000, scoped, tag = 'internal scratch']
  %s0 = inlined_call_operand.vmem [shape: f32[2,18,18,3], index: 0, kind: input, shape index: {}]
  %s1 = inlined_call_operand.vmem [shape: bf16[9,3,64], index: 1, kind: input, shape index: {}]
  %s2 = inlined_call_operand.vmem [shape: f32[1,64], index: 2, kind: input, shape index: {}]
  %s3 = inlined_call_operand.vmem [shape: f32[1,64], index: 3, kind: input, shape index: {}]
  %s4 = inlined_call_operand.hbm [shape: bf16[2,16,16,64], index: 4, kind: output, shape index: {}]
  %s5 = sld [smem:[#allocation0]]
  $region49: #{tpu_custom_call.1} parent=0
    _
  %s7 = ssub.s32 1, %s5
  %s8 = scalar_select 0, %s7, %s5
  $region1: #{tpu_custom_call.1} parent=0
    #allocation2 [shape = 'u8[131072]{0}', space=vmem, size = 0x20000, scoped, tag = 'output window, operand 0']
    #allocation3 [shape = 's32[2]{0}', space=sflag, size = 0x8, scoped, tag = 'scoped memory for tpu_custom_call.1']
    %9 = vsyncpa [#allocation3], 0
    %s10 = scalar_lea.sflag [#allocation3], 1
    %11 = vsyncpa %s10, 0
    loop: start=0, step=1, limit=4
    $region2: #{tpu_custom_call.1} parent=1 // loop_pre_header
      _
    $region3: #{tpu_custom_call.1} parent=1 // loop_header
      %s13 = sphi 0, %s17
      %p14 = scmp.ge.s32.totalorder %s13, 4
      %s20 = sphi 0, %s32
      %s21 = sphi 0, %s28
      %s22 = sphi 0, %s20
      %s23 = sphi 0, %s21
      %s24 = sphi 0, %s22
      %s25 = sphi 0, %s23
      %s35 = sphi 0, %s37
      %s38 = sphi 0, %s35
      %s39 = sphi 0, %s38
      %s55 = sphi 0, %s39
      %s59 = sphi 0, %s59
      %s61 = sphi 0, %s59
      %s62 = sphi 0, %s61
      %s76 = sphi 0, %s62
      %s80 = sphi 0, %s80
      %s82 = sphi 0, %s80
      %s83 = sphi 0, %s82
      %s97 = sphi 0, %s83
      %s101 = sphi 0, %s101
      %s103 = sphi 0, %s101
      %s104 = sphi 0, %s103
      %s118 = sphi 0, %s104
      %s126 = sphi 0, %s128
      %s129 = sphi 0, %s126
      %s130 = sphi 0, %s129
      %s146 = sphi 0, %s130
    $region4: #{tpu_custom_call.1} parent=1 // loop_header_branch
      %16 = sbr.rel (%p14) target = $region8
    $region5: #{tpu_custom_call.1} parent=1 // loop_body
      %s18 = ssub.s32 %s13, 1
      %s19 = ssub.s32 %s13, 2
      %s26 = sadd.s32 1, %s21
      %p27 = scmp.ge.s32.totalorder %s26, 1
      %s28 = scalar_select %p27, 0, %s26
      %s29 = sadd.s32 1, %s20
      %s30 = scalar_select %p27, %s29, %s20
      %p31 = scmp.ge.s32.totalorder %s30, 2
      %s32 = scalar_select %p31, 0, %s30
      %s33 = ssub.s32 %s20, %s32
      %p34 = scmp.eq.s32.totalorder %s33, 0
      %s36 = sadd.s32 %s35, 1
      %s37 = scalar_select %p34, %s35, %s36
      %p40 = pneg %p34
      %p41 = scmp.eq.s32.totalorder %s13, 1
      %p42 = por %p40, %p41
      %p43 = scmp.ne.s32.totalorder %s35, %s38
      %p44 = scmp.eq.s32.totalorder %s13, 0
      %p45 = por %p43, %p44
      %p46 = scmp.ne.s32.totalorder %s35, %s38
      %p47 = scmp.eq.s32.totalorder %s18, 1
      %p48 = por %p46, %p47
      %p49 = scmp.ne.s32.totalorder %s38, %s39
      %p50 = scmp.eq.s32.totalorder %s18, 0
      %p51 = por %p49, %p50
      %p52 = scmp.ne.s32.totalorder %s38, %s39
      %p53 = scmp.eq.s32.totalorder %s19, 1
      %p54 = por %p52, %p53
      %p56 = scmp.ne.s32.totalorder %s39, %s55
      %p57 = scmp.eq.s32.totalorder %s19, 0
      %p58 = por %p56, %p57
      %s60 = sadd.s32 %s59, 1
      %p63 = scmp.eq.s32.totalorder %s13, 1
      %p64 = scmp.ne.s32.totalorder %s59, %s61
      %p65 = scmp.eq.s32.totalorder %s13, 0
      %p66 = por %p64, %p65
      %p67 = scmp.ne.s32.totalorder %s59, %s61
      %p68 = scmp.eq.s32.totalorder %s18, 1
      %p69 = por %p67, %p68
      %p70 = scmp.ne.s32.totalorder %s61, %s62
      %p71 = scmp.eq.s32.totalorder %s18, 0
      %p72 = por %p70, %p71
      %p73 = scmp.ne.s32.totalorder %s61, %s62
      %p74 = scmp.eq.s32.totalorder %s19, 1
      %p75 = por %p73, %p74
      %p77 = scmp.ne.s32.totalorder %s62, %s76
      %p78 = scmp.eq.s32.totalorder %s19, 0
      %p79 = por %p77, %p78
      %s81 = sadd.s32 %s80, 1
      %p84 = scmp.eq.s32.totalorder %s13, 1
      %p85 = scmp.ne.s32.totalorder %s80, %s82
      %p86 = scmp.eq.s32.totalorder %s13, 0
      %p87 = por %p85, %p86
      %p88 = scmp.ne.s32.totalorder %s80, %s82
      %p89 = scmp.eq.s32.totalorder %s18, 1
      %p90 = por %p88, %p89
      %p91 = scmp.ne.s32.totalorder %s82, %s83
      %p92 = scmp.eq.s32.totalorder %s18, 0
      %p93 = por %p91, %p92
      %p94 = scmp.ne.s32.totalorder %s82, %s83
      %p95 = scmp.eq.s32.totalorder %s19, 1
      %p96 = por %p94, %p95
      %p98 = scmp.ne.s32.totalorder %s83, %s97
      %p99 = scmp.eq.s32.totalorder %s19, 0
      %p100 = por %p98, %p99
      %s102 = sadd.s32 %s101, 1
      %p105 = scmp.eq.s32.totalorder %s13, 1
      %p106 = scmp.ne.s32.totalorder %s101, %s103
      %p107 = scmp.eq.s32.totalorder %s13, 0
      %p108 = por %p106, %p107
      %p109 = scmp.ne.s32.totalorder %s101, %s103
      %p110 = scmp.eq.s32.totalorder %s18, 1
      %p111 = por %p109, %p110
      %p112 = scmp.ne.s32.totalorder %s103, %s104
      %p113 = scmp.eq.s32.totalorder %s18, 0
      %p114 = por %p112, %p113
      %p115 = scmp.ne.s32.totalorder %s103, %s104
      %p116 = scmp.eq.s32.totalorder %s19, 1
      %p117 = por %p115, %p116
      %p119 = scmp.ne.s32.totalorder %s104, %s118
      %p120 = scmp.eq.s32.totalorder %s19, 0
      %p121 = por %p119, %p120
      %s122 = ssub.s32 %s20, %s32
      %s123 = ssub.s32 %s21, %s28
      %s124 = sor.u32 %s122, %s123
      %p125 = scmp.eq.s32.totalorder %s124, 0
      %s127 = sadd.s32 %s126, 1
      %s128 = scalar_select %p125, %s126, %s127
      %p131 = pneg %p125
      %p132 = scmp.eq.s32.totalorder %s13, 1
      %p133 = por %p131, %p132
      %p134 = scmp.ne.s32.totalorder %s126, %s129
      %p135 = scmp.eq.s32.totalorder %s13, 0
      %p136 = por %p134, %p135
      %p137 = scmp.ne.s32.totalorder %s126, %s129
      %p138 = scmp.eq.s32.totalorder %s18, 1
      %p139 = por %p137, %p138
      %p140 = scmp.ne.s32.totalorder %s129, %s130
      %p141 = scmp.eq.s32.totalorder %s18, 0
      %p142 = por %p140, %p141
      %p143 = scmp.ne.s32.totalorder %s129, %s130
      %p144 = scmp.eq.s32.totalorder %s19, 1
      %p145 = por %p143, %p144
      %p147 = scmp.ne.s32.totalorder %s130, %s146
      %p148 = scmp.eq.s32.totalorder %s19, 0
      %p149 = por %p147, %p148
      %p150 = scmp.le.s32.totalorder 1, %s13
      %p151 = scmp.lt.s32.totalorder %s13, 3
      %p152 = pnand %p150, %p151
      %p153 = pneg %p152
      // Predicated region
      $region9: #{tpu_custom_call.1} parent=5 // pred_check
        _
      $region10: #{tpu_custom_call.1} parent=5 // pred_check_branch
        %155 = sbr.rel (%p152) target = $region12
      $region11: #{tpu_custom_call.1} parent=5 // pred_region
        %s156 = ssub.s32 %s13, 1
        // Predicated region
        $region13: #{tpu_custom_call.1} parent=11 // pred_check
          %p157 = pneg %p72
        $region14: #{tpu_custom_call.1} parent=11 // pred_check_branch
          %159 = sbr.rel (%p157) target = $region16
        $region15: #{tpu_custom_call.1} parent=11 // pred_region
          _
        $region16: #{tpu_custom_call.1} parent=11 // pred_fallthru
          _
        // Predicated region
        $region17: #{tpu_custom_call.1} parent=11 // pred_check
          %p160 = pneg %p93
        $region18: #{tpu_custom_call.1} parent=11 // pred_check_branch
          %162 = sbr.rel (%p160) target = $region20
        $region19: #{tpu_custom_call.1} parent=11 // pred_region
          _
        $region20: #{tpu_custom_call.1} parent=11 // pred_fallthru
          _
        // Predicated region
        $region21: #{tpu_custom_call.1} parent=11 // pred_check
          %p163 = pneg %p114
        $region22: #{tpu_custom_call.1} parent=11 // pred_check_branch
          %165 = sbr.rel (%p163) target = $region24
        $region23: #{tpu_custom_call.1} parent=11 // pred_region
          _
        $region24: #{tpu_custom_call.1} parent=11 // pred_fallthru
          _
      $region12: #{tpu_custom_call.1} parent=5 // pred_fallthru
        _
      %p166 = scmp.lt.s32.totalorder %s13, 2
      // Predicated region
      $region25: #{tpu_custom_call.1} parent=5 // pred_check
        %p167 = pneg %p166
      $region26: #{tpu_custom_call.1} parent=5 // pred_check_branch
        %169 = sbr.rel (%p167) target = $region28
      $region27: #{tpu_custom_call.1} parent=5 // pred_region
        // Predicated region
        $region29: #{tpu_custom_call.1} parent=27 // pred_check
          %p170 = pneg %p45
        $region30: #{tpu_custom_call.1} parent=27 // pred_check_branch
          %172 = sbr.rel (%p170) target = $region32
        $region31: #{tpu_custom_call.1} parent=27 // pred_region
          %p173 = scmp.lt.s32.totalorder %s20, 1
          %s174 = scalar_select %p173, %s20, 1
          %s175 = smul.addr %s174, 54
          %s176 = smul.addr %s175, 8
          %s177 = scalar_lea.vmem %s0, %s176
        $region32: #{tpu_custom_call.1} parent=27 // pred_fallthru
          _
      $region28: #{tpu_custom_call.1} parent=5 // pred_fallthru
        _
      %p178 = scmp.le.s32.totalorder 1, %s13
      %p179 = scmp.lt.s32.totalorder %s13, 3
      %p180 = pnand %p178, %p179
      %p181 = pneg %p180
      // Predicated region
      $region33: #{tpu_custom_call.1} parent=5 // pred_check
        _
      $region34: #{tpu_custom_call.1} parent=5 // pred_check_branch
        %183 = sbr.rel (%p180) target = $region36
      $region35: #{tpu_custom_call.1} parent=5 // pred_region
        %s184 = ssub.s32 %s13, 1
        %p185 = scmp.lt.s32.totalorder %s22, 1
        %s186 = scalar_select %p185, %s22, 1
        %s187 = smul.addr %s186, 54
        %s188 = smul.addr %s187, 8
        %s189 = scalar_lea.vmem %s0, %s188
        %p190 = pneg %p51
        %p191 = pneg %p48
        %p192 = pneg %p72
        %p193 = pneg %p69
        %p194 = pneg %p93
        %p195 = pneg %p90
        %p196 = pneg %p114
        %p197 = pneg %p111
        %p198 = pneg %p142
        %p199 = pneg %p139
        %s200 = sand.u32 %s129, 1
        %s201 = scalar_lea.sflag [#allocation3], %s200
        %s202 = sand.u32 %s129, 1
        %s203 = smul.addr %s202, 128
        %s204 = scalar_lea.vmem [#allocation2], %s203
        %p205 = scmp.lt.s32.totalorder %s22, 1
        %s206 = scalar_select %p205, %s22, 1
        %s207 = smul.addr %s206, 54
        %s208 = smul.addr %s207, 8
        %s209 = scalar_lea.vmem %s0, %s208
        %s210 = smul.u32 16, %s23
        %s212 = smul.u32 %s23, 16
        %s213 = smul.u32 %s212, 24
        %s214 = scalar_lea.vmem %s209, %s213
        %v215 = vld [vmem:[%s214] sm:$0xff]
        %v216 = vld [vmem:[%s214 + $0x8] sm:$0xff]
        %v217 = vld [vmem:[%s214 + $0x10] sm:$0x3]
        %v218 = vld [vmem:[%s214 + $0x18] sm:$0xff]
        %v219 = vld [vmem:[%s214 + $0x20] sm:$0xff]
        %v220 = vld [vmem:[%s214 + $0x28] sm:$0x3]
        %v221 = vld [vmem:[%s214 + $0x30] sm:$0xff]
        %v222 = vld [vmem:[%s214 + $0x38] sm:$0xff]
        %v223 = vld [vmem:[%s214 + $0x40] sm:$0x3]
        %v224 = vld [vmem:[%s214 + $0x48] sm:$0xff]
        %v225 = vld [vmem:[%s214 + $0x50] sm:$0xff]
        %v226 = vld [vmem:[%s214 + $0x58] sm:$0x3]
        %v227 = vld [vmem:[%s214 + $0x60] sm:$0xff]
        %v228 = vld [vmem:[%s214 + $0x68] sm:$0xff]
        %v229 = vld [vmem:[%s214 + $0x70] sm:$0x3]
        %v230 = vld [vmem:[%s214 + $0x78] sm:$0xff]
        %v231 = vld [vmem:[%s214 + $0x80] sm:$0xff]
        %v232 = vld [vmem:[%s214 + $0x88] sm:$0x3]
        %v233 = vld [vmem:[%s214 + $0x90] sm:$0xff]
        %v234 = vld [vmem:[%s214 + $0x98] sm:$0xff]
        %v235 = vld [vmem:[%s214 + $0xa0] sm:$0x3]
        %v236 = vld [vmem:[%s214 + $0xa8] sm:$0xff]
        %v237 = vld [vmem:[%s214 + $0xb0] sm:$0xff]
        %v238 = vld [vmem:[%s214 + $0xb8] sm:$0x3]
        %v239 = vld [vmem:[%s214 + $0xc0] sm:$0xff]
        %v240 = vld [vmem:[%s214 + $0xc8] sm:$0xff]
        %v241 = vld [vmem:[%s214 + $0xd0] sm:$0x3]
        %v242 = vld [vmem:[%s214 + $0xd8] sm:$0xff]
        %v243 = vld [vmem:[%s214 + $0xe0] sm:$0xff]
        %v244 = vld [vmem:[%s214 + $0xe8] sm:$0x3]
        %v245 = vld [vmem:[%s214 + $0xf0] sm:$0xff]
        %v246 = vld [vmem:[%s214 + $0xf8] sm:$0xff]
        %v247 = vld [vmem:[%s214 + $0x100] sm:$0x3]
        %v248 = vld [vmem:[%s214 + $0x108] sm:$0xff]
        %v249 = vld [vmem:[%s214 + $0x110] sm:$0xff]
        %v250 = vld [vmem:[%s214 + $0x118] sm:$0x3]
        %v251 = vld [vmem:[%s214 + $0x120] sm:$0xff]
        %v252 = vld [vmem:[%s214 + $0x128] sm:$0xff]
        %v253 = vld [vmem:[%s214 + $0x130] sm:$0x3]
        %v254 = vld [vmem:[%s214 + $0x138] sm:$0xff]
        %v255 = vld [vmem:[%s214 + $0x140] sm:$0xff]
        %v256 = vld [vmem:[%s214 + $0x148] sm:$0x3]
        %v257 = vld [vmem:[%s214 + $0x150] sm:$0xff]
        %v258 = vld [vmem:[%s214 + $0x158] sm:$0xff]
        %v259 = vld [vmem:[%s214 + $0x160] sm:$0x3]
        %v260 = vld [vmem:[%s214 + $0x168] sm:$0xff]
        %v261 = vld [vmem:[%s214 + $0x170] sm:$0xff]
        %v262 = vld [vmem:[%s214 + $0x178] sm:$0x3]
        %v263 = vld [vmem:[%s214 + $0x180] sm:$0xff]
        %v264 = vld [vmem:[%s214 + $0x188] sm:$0xff]
        %v265 = vld [vmem:[%s214 + $0x190] sm:$0x3]
        %v266 = vld [vmem:[%s214 + $0x198] sm:$0xff]
        %v267 = vld [vmem:[%s214 + $0x1a0] sm:$0xff]
        %v268 = vld [vmem:[%s214 + $0x1a8] sm:$0x3]
        %v269 = vpack.c.bf16 %v216, %v215
        %v270 = vpack.c.bf16 %v217, %v217
        %v271 = vpack.c.bf16 %v219, %v218
        %v272 = vpack.c.bf16 %v220, %v220
        %v273 = vpack.c.bf16 %v222, %v221
        %v274 = vpack.c.bf16 %v223, %v223
        %v275 = vpack.c.bf16 %v225, %v224
        %v276 = vpack.c.bf16 %v226, %v226
        %v277 = vpack.c.bf16 %v228, %v227
        %v278 = vpack.c.bf16 %v229, %v229
        %v279 = vpack.c.bf16 %v231, %v230
        %v280 = vpack.c.bf16 %v232, %v232
        %v281 = vpack.c.bf16 %v234, %v233
        %v282 = vpack.c.bf16 %v235, %v235
        %v283 = vpack.c.bf16 %v237, %v236
        %v284 = vpack.c.bf16 %v238, %v238
        %v285 = vpack.c.bf16 %v240, %v239
        %v286 = vpack.c.bf16 %v241, %v241
        %v287 = vpack.c.bf16 %v243, %v242
        %v288 = vpack.c.bf16 %v244, %v244
        %v289 = vpack.c.bf16 %v246, %v245
        %v290 = vpack.c.bf16 %v247, %v247
        %v291 = vpack.c.bf16 %v249, %v248
        %v292 = vpack.c.bf16 %v250, %v250
        %v293 = vpack.c.bf16 %v252, %v251
        %v294 = vpack.c.bf16 %v253, %v253
        %v295 = vpack.c.bf16 %v255, %v254
        %v296 = vpack.c.bf16 %v256, %v256
        %v297 = vpack.c.bf16 %v258, %v257
        %v298 = vpack.c.bf16 %v259, %v259
        %v299 = vpack.c.bf16 %v261, %v260
        %v300 = vpack.c.bf16 %v262, %v262
        %v301 = vpack.c.bf16 %v264, %v263
        %v302 = vpack.c.bf16 %v265, %v265
        %v303 = vpack.c.bf16 %v267, %v266
        %v304 = vpack.c.bf16 %v268, %v268
        %v305 = vld [vmem:[%s1] sm:$0x3]
        %vm306 = vsmask.f32 7424
        %v308 = vshrl.u32 %v269, 16
        %v310 = vshll.u32 %v269, 16
        %v312 = vrot.slane %v310, 1
        %v313 = vor.u32 %v308, %v312
        %v315 = vshll.u32 %v270, 16
        %v317 = vrot.slane %v315, 1
        %v318 = vsel %vm306, %v313, %v317
        %v320 = vshrl.u32 %v271, 16
        %v322 = vshll.u32 %v271, 16
        %v324 = vrot.slane %v322, 1
        %v325 = vor.u32 %v320, %v324
        %v327 = vshll.u32 %v272, 16
        %v329 = vrot.slane %v327, 1
        %v330 = vsel %vm306, %v325, %v329
        %v332 = vshrl.u32 %v273, 16
        %v334 = vshll.u32 %v273, 16
        %v336 = vrot.slane %v334, 1
        %v337 = vor.u32 %v332, %v336
        %v339 = vshll.u32 %v274, 16
        %v341 = vrot.slane %v339, 1
        %v342 = vsel %vm306, %v337, %v341
        %v344 = vshrl.u32 %v275, 16
        %v346 = vshll.u32 %v275, 16
        %v348 = vrot.slane %v346, 1
        %v349 = vor.u32 %v344, %v348
        %v351 = vshll.u32 %v276, 16
        %v353 = vrot.slane %v351, 1
        %v354 = vsel %vm306, %v349, %v353
        %v356 = vshrl.u32 %v277, 16
        %v358 = vshll.u32 %v277, 16
        %v360 = vrot.slane %v358, 1
        %v361 = vor.u32 %v356, %v360
        %v363 = vshll.u32 %v278, 16
        %v365 = vrot.slane %v363, 1
        %v366 = vsel %vm306, %v361, %v365
        %v368 = vshrl.u32 %v279, 16
        %v370 = vshll.u32 %v279, 16
        %v372 = vrot.slane %v370, 1
        %v373 = vor.u32 %v368, %v372
        %v375 = vshll.u32 %v280, 16
        %v377 = vrot.slane %v375, 1
        %v378 = vsel %vm306, %v373, %v377
        %v380 = vshrl.u32 %v281, 16
        %v382 = vshll.u32 %v281, 16
        %v384 = vrot.slane %v382, 1
        %v385 = vor.u32 %v380, %v384
        %v387 = vshll.u32 %v282, 16
        %v389 = vrot.slane %v387, 1
        %v390 = vsel %vm306, %v385, %v389
        %v392 = vshrl.u32 %v283, 16
        %v394 = vshll.u32 %v283, 16
        %v396 = vrot.slane %v394, 1
        %v397 = vor.u32 %v392, %v396
        %v399 = vshll.u32 %v284, 16
        %v401 = vrot.slane %v399, 1
        %v402 = vsel %vm306, %v397, %v401
        %v404 = vshrl.u32 %v285, 16
        %v406 = vshll.u32 %v285, 16
        %v408 = vrot.slane %v406, 1
        %v409 = vor.u32 %v404, %v408
        %v411 = vshll.u32 %v286, 16
        %v413 = vrot.slane %v411, 1
        %v414 = vsel %vm306, %v409, %v413
        %v416 = vshrl.u32 %v287, 16
        %v418 = vshll.u32 %v287, 16
        %v420 = vrot.slane %v418, 1
        %v421 = vor.u32 %v416, %v420
        %v423 = vshll.u32 %v288, 16
        %v425 = vrot.slane %v423, 1
        %v426 = vsel %vm306, %v421, %v425
        %v428 = vshrl.u32 %v289, 16
        %v430 = vshll.u32 %v289, 16
        %v432 = vrot.slane %v430, 1
        %v433 = vor.u32 %v428, %v432
        %v435 = vshll.u32 %v290, 16
        %v437 = vrot.slane %v435, 1
        %v438 = vsel %vm306, %v433, %v437
        %v440 = vshrl.u32 %v291, 16
        %v442 = vshll.u32 %v291, 16
        %v444 = vrot.slane %v442, 1
        %v445 = vor.u32 %v440, %v444
        %v447 = vshll.u32 %v292, 16
        %v449 = vrot.slane %v447, 1
        %v450 = vsel %vm306, %v445, %v449
        %v452 = vshrl.u32 %v293, 16
        %v454 = vshll.u32 %v293, 16
        %v456 = vrot.slane %v454, 1
        %v457 = vor.u32 %v452, %v456
        %v459 = vshll.u32 %v294, 16
        %v461 = vrot.slane %v459, 1
        %v462 = vsel %vm306, %v457, %v461
        %v464 = vshrl.u32 %v295, 16
        %v466 = vshll.u32 %v295, 16
        %v468 = vrot.slane %v466, 1
        %v469 = vor.u32 %v464, %v468
        %v471 = vshll.u32 %v296, 16
        %v473 = vrot.slane %v471, 1
        %v474 = vsel %vm306, %v469, %v473
        %v476 = vshrl.u32 %v297, 16
        %v478 = vshll.u32 %v297, 16
        %v480 = vrot.slane %v478, 1
        %v481 = vor.u32 %v476, %v480
        %v483 = vshll.u32 %v298, 16
        %v485 = vrot.slane %v483, 1
        %v486 = vsel %vm306, %v481, %v485
        %v488 = vshrl.u32 %v299, 16
        %v490 = vshll.u32 %v299, 16
        %v492 = vrot.slane %v490, 1
        %v493 = vor.u32 %v488, %v492
        %v495 = vshll.u32 %v300, 16
        %v497 = vrot.slane %v495, 1
        %v498 = vsel %vm306, %v493, %v497
        %s499 = scalar_lea.vmem %s1, 2
        %v500 = vld [vmem:[%s499] sm:$0x3]
        %vm501 = vcmask 23552
        %v503 = vsel %vm501, %v318, 0
        %v506 = vsel %vm501, %v330, 0
        %v509 = vsel %vm501, %v342, 0
        %v512 = vsel %vm501, %v354, 0
        %v515 = vsel %vm501, %v366, 0
        %v518 = vsel %vm501, %v378, 0
        %v521 = vsel %vm501, %v390, 0
        %v524 = vsel %vm501, %v402, 0
        %v527 = vsel %vm501, %v414, 0
        %v530 = vsel %vm501, %v426, 0
        %v533 = vsel %vm501, %v438, 0
        %v536 = vsel %vm501, %v450, 0
        %v539 = vsel %vm501, %v462, 0
        %v542 = vsel %vm501, %v474, 0
        %v545 = vsel %vm501, %v486, 0
        %v548 = vsel %vm501, %v498, 0
        %vm550 = vcmask 1040384
        %vm551 = vcmask 1041408
        %v552 = vsel %vm550, 4294967295, 65535
        %v553 = vsel %vm551, %v552, 0
        %v555 = vand.u32 %v500, %v553
        %557 = vmatprep.subr.bf16.mxu0 0
        %558 = vmatpush1.bf16.msra.mxu0 %v555
        %559 = vmatprep.subr.bf16.mxu0 0
        %560 = vmatpush1.bf16.msra.mxu0 0
        %561 = vmatprep.subr.bf16.mxu0 0
        %562 = vmatpush1.bf16.msra.mxu0 0
        %563 = vmatprep.subr.bf16.mxu0 0
        %564 = vmatpush1.bf16.msra.mxu0 0
        %565 = vmatprep.subr.bf16.mxu0 0
        %566 = vmatpush1.bf16.msra.mxu0 0
        %567 = vmatprep.subr.bf16.mxu0 0
        %568 = vmatpush1.bf16.msra.mxu0 0
        %569 = vmatprep.subr.bf16.mxu0 0
        %570 = vmatpush1.bf16.msra.mxu0 0
        %571 = vmatprep.subr.bf16.mxu0 0
        %572 = vmatpush1.bf16.msra.mxu0 0
        %573 = vmatprep.subr.bf16.mxu0 0
        %574 = vmatpush1.bf16.msra.mxu0 0
        %575 = vmatprep.subr.bf16.mxu0 0
        %576 = vmatpush1.bf16.msra.mxu0 0
        %577 = vmatprep.subr.bf16.mxu0 0
        %578 = vmatpush1.bf16.msra.mxu0 0
        %579 = vmatprep.subr.bf16.mxu0 0
        %580 = vmatpush1.bf16.msra.mxu0 0
        %581 = vmatprep.subr.bf16.mxu0 0
        %582 = vmatpush1.bf16.msra.mxu0 0
        %583 = vmatprep.subr.bf16.mxu0 0
        %584 = vmatpush1.bf16.msra.mxu0 0
        %585 = vmatprep.subr.bf16.mxu0 0
        %586 = vmatpush1.bf16.msra.mxu0 0
        %587 = vmatprep.subr.bf16.mxu0 0
        %588 = vmatpush1.bf16.msra.mxu0 0
        %589 = vmatprep.mubr.bf16.mxu0 0
        %590 = vmatmul.mubr.bf16.gmra.mrb[0].mxu0 %v503
        %v591 = vpop.f32.mrb[0].mxu0
        %v592 = vadd.f32 0.0, %v591
        %v593 = vpop.f32.mrb[0].mxu0
        %v594 = vpop.f32.mrb[0].mxu0
        %v595 = vadd.f32 0.0, %v594
        %v596 = vpop.f32.mrb[0].mxu0
        %597 = vmatprep.mubr.bf16.mxu0 0
        %598 = vmatmul.mubr.bf16.gmra.mrb[0].mxu0 %v506
        %v599 = vpop.f32.mrb[0].mxu0
        %v600 = vadd.f32 0.0, %v599
        %v601 = vpop.f32.mrb[0].mxu0
        %v602 = vpop.f32.mrb[0].mxu0
        %v603 = vadd.f32 0.0, %v602
        %v604 = vpop.f32.mrb[0].mxu0
        %605 = vmatprep.mubr.bf16.mxu0 0
        %606 = vmatmul.mubr.bf16.gmra.mrb[0].mxu0 %v509
        %v607 = vpop.f32.mrb[0].mxu0
        %v608 = vadd.f32 0.0, %v607
        %v609 = vpop.f32.mrb[0].mxu0
        %v610 = vpop.f32.mrb[0].mxu0
        %v611 = vadd.f32 0.0, %v610
        %v612 = vpop.f32.mrb[0].mxu0
        %613 = vmatprep.mubr.bf16.mxu0 0
        %614 = vmatmul.mubr.bf16.gmra.mrb[0].mxu0 %v512
        %v615 = vpop.f32.mrb[0].mxu0
        %v616 = vadd.f32 0.0, %v615
        %v617 = vpop.f32.mrb[0].mxu0
        %v618 = vpop.f32.mrb[0].mxu0
        %v619 = vadd.f32 0.0, %v618
        %v620 = vpop.f32.mrb[0].mxu0
        %621 = vmatprep.mubr.bf16.mxu0 0
        %622 = vmatmul.mubr.bf16.gmra.mrb[0].mxu0 %v515
        %v623 = vpop.f32.mrb[0].mxu0
        %v624 = vadd.f32 0.0, %v623
        %v625 = vpop.f32.mrb[0].mxu0
        %v626 = vpop.f32.mrb[0].mxu0
        %v627 = vadd.f32 0.0, %v626
        %v628 = vpop.f32.mrb[0].mxu0
        %629 = vmatprep.mubr.bf16.mxu0 0
        %630 = vmatmul.mubr.bf16.gmra.mrb[0].mxu0 %v518
        %v631 = vpop.f32.mrb[0].mxu0
        %v632 = vadd.f32 0.0, %v631
        %v633 = vpop.f32.mrb[0].mxu0
        %v634 = vpop.f32.mrb[0].mxu0
        %v635 = vadd.f32 0.0, %v634
        %v636 = vpop.f32.mrb[0].mxu0
        %637 = vmatprep.mubr.bf16.mxu0 0
        %638 = vmatmul.mubr.bf16.gmra.mrb[0].mxu0 %v521
        %v639 = vpop.f32.mrb[0].mxu0
        %v640 = vadd.f32 0.0, %v639
        %v641 = vpop.f32.mrb[0].mxu0
        %v642 = vpop.f32.mrb[0].mxu0
        %v643 = vadd.f32 0.0, %v642
        %v644 = vpop.f32.mrb[0].mxu0
        %645 = vmatprep.mubr.bf16.mxu0 0
        %646 = vmatmul.mubr.bf16.gmra.mrb[0].mxu0 %v524
        %v647 = vpop.f32.mrb[0].mxu0
        %v648 = vadd.f32 0.0, %v647
        %v649 = vpop.f32.mrb[0].mxu0
        %v650 = vpop.f32.mrb[0].mxu0
        %v651 = vadd.f32 0.0, %v650
        %v652 = vpop.f32.mrb[0].mxu0
        %653 = vmatprep.mubr.bf16.mxu0 0
        %654 = vmatmul.mubr.bf16.gmra.mrb[0].mxu0 %v527
        %v655 = vpop.f32.mrb[0].mxu0
        %v656 = vadd.f32 0.0, %v655
        %v657 = vpop.f32.mrb[0].mxu0
        %v658 = vpop.f32.mrb[0].mxu0
        %v659 = vadd.f32 0.0, %v658
        %v660 = vpop.f32.mrb[0].mxu0
        %661 = vmatprep.mubr.bf16.mxu0 0
        %662 = vmatmul.mubr.bf16.gmra.mrb[0].mxu0 %v530
        %v663 = vpop.f32.mrb[0].mxu0
        %v664 = vadd.f32 0.0, %v663
        %v665 = vpop.f32.mrb[0].mxu0
        %v666 = vpop.f32.mrb[0].mxu0
        %v667 = vadd.f32 0.0, %v666
        %v668 = vpop.f32.mrb[0].mxu0
        %669 = vmatprep.mubr.bf16.mxu0 0
        %670 = vmatmul.mubr.bf16.gmra.mrb[0].mxu0 %v533
        %v671 = vpop.f32.mrb[0].mxu0
        %v672 = vadd.f32 0.0, %v671
        %v673 = vpop.f32.mrb[0].mxu0
        %v674 = vpop.f32.mrb[0].mxu0
        %v675 = vadd.f32 0.0, %v674
        %v676 = vpop.f32.mrb[0].mxu0
        %677 = vmatprep.mubr.bf16.mxu0 0
        %678 = vmatmul.mubr.bf16.gmra.mrb[0].mxu0 %v536
        %v679 = vpop.f32.mrb[0].mxu0
        %v680 = vadd.f32 0.0, %v679
        %v681 = vpop.f32.mrb[0].mxu0
        %v682 = vpop.f32.mrb[0].mxu0
        %v683 = vadd.f32 0.0, %v682
        %v684 = vpop.f32.mrb[0].mxu0
        %685 = vmatprep.mubr.bf16.mxu0 0
        %686 = vmatmul.mubr.bf16.gmra.mrb[0].mxu0 %v539
        %v687 = vpop.f32.mrb[0].mxu0
        %v688 = vadd.f32 0.0, %v687
        %v689 = vpop.f32.mrb[0].mxu0
        %v690 = vpop.f32.mrb[0].mxu0
        %v691 = vadd.f32 0.0, %v690
        %v692 = vpop.f32.mrb[0].mxu0
        %693 = vmatprep.mubr.bf16.mxu0 0
        %694 = vmatmul.mubr.bf16.gmra.mrb[0].mxu0 %v542
        %v695 = vpop.f32.mrb[0].mxu0
        %v696 = vadd.f32 0.0, %v695
        %v697 = vpop.f32.mrb[0].mxu0
        %v698 = vpop.f32.mrb[0].mxu0
        %v699 = vadd.f32 0.0, %v698
        %v700 = vpop.f32.mrb[0].mxu0
        %701 = vmatprep.mubr.bf16.mxu0 0
        %702 = vmatmul.mubr.bf16.gmra.mrb[0].mxu0 %v545
        %v703 = vpop.f32.mrb[0].mxu0
        %v704 = vadd.f32 0.0, %v703
        %v705 = vpop.f32.mrb[0].mxu0
        %v706 = vpop.f32.mrb[0].mxu0
        %v707 = vadd.f32 0.0, %v706
        %v708 = vpop.f32.mrb[0].mxu0
        %709 = vmatprep.mubr.bf16.mxu0 0
        %710 = vmatmul.mubr.bf16.gmra.mrb[0].mxu0 %v548
        %v711 = vpop.f32.mrb[0].mxu0
        %v712 = vadd.f32 0.0, %v711
        %v713 = vpop.f32.mrb[0].mxu0
        %v714 = vpop.f32.mrb[0].mxu0
        %v715 = vadd.f32 0.0, %v714
        %v716 = vpop.f32.mrb[0].mxu0
        %717 = vdwg.mxu0
        %v718 = vsel %vm501, %v269, 0
        %v720 = vsel %vm501, %v271, 0
        %v722 = vsel %vm501, %v273, 0
        %v724 = vsel %vm501, %v275, 0
        %v726 = vsel %vm501, %v277, 0
        %v728 = vsel %vm501, %v279, 0
        %v730 = vsel %vm501, %v281, 0
        %v732 = vsel %vm501, %v283, 0
        %v734 = vsel %vm501, %v285, 0
        %v736 = vsel %vm501, %v287, 0
        %v738 = vsel %vm501, %v289, 0
        %v740 = vsel %vm501, %v291, 0
        %v742 = vsel %vm501, %v293, 0
        %v744 = vsel %vm501, %v295, 0
        %v746 = vsel %vm501, %v297, 0
        %v748 = vsel %vm501, %v299, 0
        %v751 = vand.u32 %v305, %v553
        %753 = vmatprep.subr.bf16.mxu0 0
        %754 = vmatpush1.bf16.msra.mxu0 %v751
        %755 = vmatprep.subr.bf16.mxu0 0
        %756 = vmatpush1.bf16.msra.mxu0 0
        %757 = vmatprep.subr.bf16.mxu0 0
        %758 = vmatpush1.bf16.msra.mxu0 0
        %759 = vmatprep.subr.bf16.mxu0 0
        %760 = vmatpush1.bf16.msra.mxu0 0
        %761 = vmatprep.subr.bf16.mxu0 0
        %762 = vmatpush1.bf16.msra.mxu0 0
        %763 = vmatprep.subr.bf16.mxu0 0
        %764 = vmatpush1.bf16.msra.mxu0 0
        %765 = vmatprep.subr.bf16.mxu0 0
        %766 = vmatpush1.bf16.msra.mxu0 0
        %767 = vmatprep.subr.bf16.mxu0 0
        %768 = vmatpush1.bf16.msra.mxu0 0
        %769 = vmatprep.subr.bf16.mxu0 0
        %770 = vmatpush1.bf16.msra.mxu0 0
        %771 = vmatprep.subr.bf16.mxu0 0
        %772 = vmatpush1.bf16.msra.mxu0 0
        %773 = vmatprep.subr.bf16.mxu0 0
        %774 = vmatpush1.bf16.msra.mxu0 0
        %775 = vmatprep.subr.bf16.mxu0 0
        %776 = vmatpush1.bf16.msra.mxu0 0
        %777 = vmatprep.subr.bf16.mxu0 0
        %778 = vmatpush1.bf16.msra.mxu0 0
        %779 = vmatprep.subr.bf16.mxu0 0
        %780 = vmatpush1.bf16.msra.mxu0 0
        %781 = vmatprep.subr.bf16.mxu0 0
        %782 = vmatpush1.bf16.msra.mxu0 0
        %783 = vmatprep.subr.bf16.mxu0 0
        %784 = vmatpush1.bf16.msra.mxu0 0
        %785 = vmatprep.mubr.bf16.mxu0 0
        %786 = vmatmul.mubr.bf16.gmra.mrb[0].mxu0 %v718
        %v787 = vpop.f32.mrb[0].mxu0
        %v788 = vadd.f32 %v592, %v787
        %v789 = vpop.f32.mrb[0].mxu0
        %v790 = vpop.f32.mrb[0].mxu0
        %v791 = vadd.f32 %v595, %v790
        %v792 = vpop.f32.mrb[0].mxu0
        %793 = vmatprep.mubr.bf16.mxu0 0
        %794 = vmatmul.mubr.bf16.gmra.mrb[0].mxu0 %v720
        %v795 = vpop.f32.mrb[0].mxu0
        %v796 = vadd.f32 %v600, %v795
        %v797 = vpop.f32.mrb[0].mxu0
        %v798 = vpop.f32.mrb[0].mxu0
        %v799 = vadd.f32 %v603, %v798
        %v800 = vpop.f32.mrb[0].mxu0
        %801 = vmatprep.mubr.bf16.mxu0 0
        %802 = vmatmul.mubr.bf16.gmra.mrb[0].mxu0 %v722
        %v803 = vpop.f32.mrb[0].mxu0
        %v804 = vadd.f32 %v608, %v803
        %v805 = vpop.f32.mrb[0].mxu0
        %v806 = vpop.f32.mrb[0].mxu0
        %v807 = vadd.f32 %v611, %v806
        %v808 = vpop.f32.mrb[0].mxu0
        %809 = vmatprep.mubr.bf16.mxu0 0
        %810 = vmatmul.mubr.bf16.gmra.mrb[0].mxu0 %v724
        %v811 = vpop.f32.mrb[0].mxu0
        %v812 = vadd.f32 %v616, %v811
        %v813 = vpop.f32.mrb[0].mxu0
        %v814 = vpop.f32.mrb[0].mxu0
        %v815 = vadd.f32 %v619, %v814
        %v816 = vpop.f32.mrb[0].mxu0
        %817 = vmatprep.mubr.bf16.mxu0 0
        %818 = vmatmul.mubr.bf16.gmra.mrb[0].mxu0 %v726
        %v819 = vpop.f32.mrb[0].mxu0
        %v820 = vadd.f32 %v624, %v819
        %v821 = vpop.f32.mrb[0].mxu0
        %v822 = vpop.f32.mrb[0].mxu0
        %v823 = vadd.f32 %v627, %v822
        %v824 = vpop.f32.mrb[0].mxu0
        %825 = vmatprep.mubr.bf16.mxu0 0
        %826 = vmatmul.mubr.bf16.gmra.mrb[0].mxu0 %v728
        %v827 = vpop.f32.mrb[0].mxu0
        %v828 = vadd.f32 %v632, %v827
        %v829 = vpop.f32.mrb[0].mxu0
        %v830 = vpop.f32.mrb[0].mxu0
        %v831 = vadd.f32 %v635, %v830
        %v832 = vpop.f32.mrb[0].mxu0
        %833 = vmatprep.mubr.bf16.mxu0 0
        %834 = vmatmul.mubr.bf16.gmra.mrb[0].mxu0 %v730
        %v835 = vpop.f32.mrb[0].mxu0
        %v836 = vadd.f32 %v640, %v835
        %v837 = vpop.f32.mrb[0].mxu0
        %v838 = vpop.f32.mrb[0].mxu0
        %v839 = vadd.f32 %v643, %v838
        %v840 = vpop.f32.mrb[0].mxu0
        %841 = vmatprep.mubr.bf16.mxu0 0
        %842 = vmatmul.mubr.bf16.gmra.mrb[0].mxu0 %v732
        %v843 = vpop.f32.mrb[0].mxu0
        %v844 = vadd.f32 %v648, %v843
        %v845 = vpop.f32.mrb[0].mxu0
        %v846 = vpop.f32.mrb[0].mxu0
        %v847 = vadd.f32 %v651, %v846
        %v848 = vpop.f32.mrb[0].mxu0
        %849 = vmatprep.mubr.bf16.mxu0 0
        %850 = vmatmul.mubr.bf16.gmra.mrb[0].mxu0 %v734
        %v851 = vpop.f32.mrb[0].mxu0
        %v852 = vadd.f32 %v656, %v851
        %v853 = vpop.f32.mrb[0].mxu0
        %v854 = vpop.f32.mrb[0].mxu0
        %v855 = vadd.f32 %v659, %v854
        %v856 = vpop.f32.mrb[0].mxu0
        %857 = vmatprep.mubr.bf16.mxu0 0
        %858 = vmatmul.mubr.bf16.gmra.mrb[0].mxu0 %v736
        %v859 = vpop.f32.mrb[0].mxu0
        %v860 = vadd.f32 %v664, %v859
        %v861 = vpop.f32.mrb[0].mxu0
        %v862 = vpop.f32.mrb[0].mxu0
        %v863 = vadd.f32 %v667, %v862
        %v864 = vpop.f32.mrb[0].mxu0
        %865 = vmatprep.mubr.bf16.mxu0 0
        %866 = vmatmul.mubr.bf16.gmra.mrb[0].mxu0 %v738
        %v867 = vpop.f32.mrb[0].mxu0
        %v868 = vadd.f32 %v672, %v867
        %v869 = vpop.f32.mrb[0].mxu0
        %v870 = vpop.f32.mrb[0].mxu0
        %v871 = vadd.f32 %v675, %v870
        %v872 = vpop.f32.mrb[0].mxu0
        %873 = vmatprep.mubr.bf16.mxu0 0
        %874 = vmatmul.mubr.bf16.gmra.mrb[0].mxu0 %v740
        %v875 = vpop.f32.mrb[0].mxu0
        %v876 = vadd.f32 %v680, %v875
        %v877 = vpop.f32.mrb[0].mxu0
        %v878 = vpop.f32.mrb[0].mxu0
        %v879 = vadd.f32 %v683, %v878
        %v880 = vpop.f32.mrb[0].mxu0
        %881 = vmatprep.mubr.bf16.mxu0 0
        %882 = vmatmul.mubr.bf16.gmra.mrb[0].mxu0 %v742
        %v883 = vpop.f32.mrb[0].mxu0
        %v884 = vadd.f32 %v688, %v883
        %v885 = vpop.f32.mrb[0].mxu0
        %v886 = vpop.f32.mrb[0].mxu0
        %v887 = vadd.f32 %v691, %v886
        %v888 = vpop.f32.mrb[0].mxu0
        %889 = vmatprep.mubr.bf16.mxu0 0
        %890 = vmatmul.mubr.bf16.gmra.mrb[0].mxu0 %v744
        %v891 = vpop.f32.mrb[0].mxu0
        %v892 = vadd.f32 %v696, %v891
        %v893 = vpop.f32.mrb[0].mxu0
        %v894 = vpop.f32.mrb[0].mxu0
        %v895 = vadd.f32 %v699, %v894
        %v896 = vpop.f32.mrb[0].mxu0
        %897 = vmatprep.mubr.bf16.mxu0 0
        %898 = vmatmul.mubr.bf16.gmra.mrb[0].mxu0 %v746
        %v899 = vpop.f32.mrb[0].mxu0
        %v900 = vadd.f32 %v704, %v899
        %v901 = vpop.f32.mrb[0].mxu0
        %v902 = vpop.f32.mrb[0].mxu0
        %v903 = vadd.f32 %v707, %v902
        %v904 = vpop.f32.mrb[0].mxu0
        %905 = vmatprep.mubr.bf16.mxu0 0
        %906 = vmatmul.mubr.bf16.gmra.mrb[0].mxu0 %v748
        %v907 = vpop.f32.mrb[0].mxu0
        %v908 = vadd.f32 %v712, %v907
        %v909 = vpop.f32.mrb[0].mxu0
        %v910 = vpop.f32.mrb[0].mxu0
        %v911 = vadd.f32 %v715, %v910
        %v912 = vpop.f32.mrb[0].mxu0
        %913 = vdwg.mxu0
        %vm946 = vcmask 1046528
        %v947 = vrot.slane %v269, 1
        %v948 = vrot.slane %v270, 1
        %v949 = vsel %vm946, %v947, %v948
        %v950 = vrot.slane %v271, 1
        %v951 = vrot.slane %v272, 1
        %v952 = vsel %vm946, %v950, %v951
        %v953 = vrot.slane %v273, 1
        %v954 = vrot.slane %v274, 1
        %v955 = vsel %vm946, %v953, %v954
        %v956 = vrot.slane %v275, 1
        %v957 = vrot.slane %v276, 1
        %v958 = vsel %vm946, %v956, %v957
        %v959 = vrot.slane %v277, 1
        %v960 = vrot.slane %v278, 1
        %v961 = vsel %vm946, %v959, %v960
        %v962 = vrot.slane %v279, 1
        %v963 = vrot.slane %v280, 1
        %v964 = vsel %vm946, %v962, %v963
        %v965 = vrot.slane %v281, 1
        %v966 = vrot.slane %v282, 1
        %v967 = vsel %vm946, %v965, %v966
        %v968 = vrot.slane %v283, 1
        %v969 = vrot.slane %v284, 1
        %v970 = vsel %vm946, %v968, %v969
        %v971 = vrot.slane %v285, 1
        %v972 = vrot.slane %v286, 1
        %v973 = vsel %vm946, %v971, %v972
        %v974 = vrot.slane %v287, 1
        %v975 = vrot.slane %v288, 1
        %v976 = vsel %vm946, %v974, %v975
        %v977 = vrot.slane %v289, 1
        %v978 = vrot.slane %v290, 1
        %v979 = vsel %vm946, %v977, %v978
        %v980 = vrot.slane %v291, 1
        %v981 = vrot.slane %v292, 1
        %v982 = vsel %vm946, %v980, %v981
        %v983 = vrot.slane %v293, 1
        %v984 = vrot.slane %v294, 1
        %v985 = vsel %vm946, %v983, %v984
        %v986 = vrot.slane %v295, 1
        %v987 = vrot.slane %v296, 1
        %v988 = vsel %vm946, %v986, %v987
        %v989 = vrot.slane %v297, 1
        %v990 = vrot.slane %v298, 1
        %v991 = vsel %vm946, %v989, %v990
        %v992 = vrot.slane %v299, 1
        %v993 = vrot.slane %v300, 1
        %v994 = vsel %vm946, %v992, %v993
        %s995 = scalar_lea.vmem %s1, 4
        %v996 = vld [vmem:[%s995] sm:$0x3]
        %v998 = vsel %vm501, %v949, 0
        %v1001 = vsel %vm501, %v952, 0
        %v1004 = vsel %vm501, %v955, 0
        %v1007 = vsel %vm501, %v958, 0
        %v1010 = vsel %vm501, %v961, 0
        %v1013 = vsel %vm501, %v964, 0
        %v1016 = vsel %vm501, %v967, 0
        %v1019 = vsel %vm501, %v970, 0
        %v1022 = vsel %vm501, %v973, 0
        %v1025 = vsel %vm501, %v976, 0
        %v1028 = vsel %vm501, %v979, 0
        %v1031 = vsel %vm501, %v982, 0
        %v1034 = vsel %vm501, %v985, 0
        %v1037 = vsel %vm501, %v988, 0
        %v1040 = vsel %vm501, %v991, 0
        %v1043 = vsel %vm501, %v994, 0
        %v1046 = vand.u32 %v996, %v553
        %1048 = vmatprep.subr.bf16.mxu0 0
        %1049 = vmatpush1.bf16.msra.mxu0 %v1046
        %1050 = vmatprep.subr.bf16.mxu0 0
        %1051 = vmatpush1.bf16.msra.mxu0 0
        %1052 = vmatprep.subr.bf16.mxu0 0
        %1053 = vmatpush1.bf16.msra.mxu0 0
        %1054 = vmatprep.subr.bf16.mxu0 0
        %1055 = vmatpush1.bf16.msra.mxu0 0
        %1056 = vmatprep.subr.bf16.mxu0 0
        %1057 = vmatpush1.bf16.msra.mxu0 0
        %1058 = vmatprep.subr.bf16.mxu0 0
        %1059 = vmatpush1.bf16.msra.mxu0 0
        %1060 = vmatprep.subr.bf16.mxu0 0
        %1061 = vmatpush1.bf16.msra.mxu0 0
        %1062 = vmatprep.subr.bf16.mxu0 0
        %1063 = vmatpush1.bf16.msra.mxu0 0
        %1064 = vmatprep.subr.bf16.mxu0 0
        %1065 = vmatpush1.bf16.msra.mxu0 0
        %1066 = vmatprep.subr.bf16.mxu0 0
        %1067 = vmatpush1.bf16.msra.mxu0 0
        %1068 = vmatprep.subr.bf16.mxu0 0
        %1069 = vmatpush1.bf16.msra.mxu0 0
        %1070 = vmatprep.subr.bf16.mxu0 0
        %1071 = vmatpush1.bf16.msra.mxu0 0
        %1072 = vmatprep.subr.bf16.mxu0 0
        %1073 = vmatpush1.bf16.msra.mxu0 0
        %1074 = vmatprep.subr.bf16.mxu0 0
        %1075 = vmatpush1.bf16.msra.mxu0 0
        %1076 = vmatprep.subr.bf16.mxu0 0
        %1077 = vmatpush1.bf16.msra.mxu0 0
        %1078 = vmatprep.subr.bf16.mxu0 0
        %1079 = vmatpush1.bf16.msra.mxu0 0
        %1080 = vmatprep.mubr.bf16.mxu0 0
        %1081 = vmatmul.mubr.bf16.gmra.mrb[0].mxu0 %v998
        %v1082 = vpop.f32.mrb[0].mxu0
        %v1083 = vadd.f32 0.0, %v1082
        %v1084 = vpop.f32.mrb[0].mxu0
        %v1085 = vpop.f32.mrb[0].mxu0
        %v1086 = vadd.f32 0.0, %v1085
        %v1087 = vpop.f32.mrb[0].mxu0
        %1088 = vmatprep.mubr.bf16.mxu0 0
        %1089 = vmatmul.mubr.bf16.gmra.mrb[0].mxu0 %v1001
        %v1090 = vpop.f32.mrb[0].mxu0
        %v1091 = vadd.f32 0.0, %v1090
        %v1092 = vpop.f32.mrb[0].mxu0
        %v1093 = vpop.f32.mrb[0].mxu0
        %v1094 = vadd.f32 0.0, %v1093
        %v1095 = vpop.f32.mrb[0].mxu0
        %1096 = vmatprep.mubr.bf16.mxu0 0
        %1097 = vmatmul.mubr.bf16.gmra.mrb[0].mxu0 %v1004
        %v1098 = vpop.f32.mrb[0].mxu0
        %v1099 = vadd.f32 0.0, %v1098
        %v1100 = vpop.f32.mrb[0].mxu0
        %v1101 = vpop.f32.mrb[0].mxu0
        %v1102 = vadd.f32 0.0, %v1101
        %v1103 = vpop.f32.mrb[0].mxu0
        %1104 = vmatprep.mubr.bf16.mxu0 0
        %1105 = vmatmul.mubr.bf16.gmra.mrb[0].mxu0 %v1007
        %v1106 = vpop.f32.mrb[0].mxu0
        %v1107 = vadd.f32 0.0, %v1106
        %v1108 = vpop.f32.mrb[0].mxu0
        %v1109 = vpop.f32.mrb[0].mxu0
        %v1110 = vadd.f32 0.0, %v1109
        %v1111 = vpop.f32.mrb[0].mxu0
        %1112 = vmatprep.mubr.bf16.mxu0 0
        %1113 = vmatmul.mubr.bf16.gmra.mrb[0].mxu0 %v1010
        %v1114 = vpop.f32.mrb[0].mxu0
        %v1115 = vadd.f32 0.0, %v1114
        %v1116 = vpop.f32.mrb[0].mxu0
        %v1117 = vpop.f32.mrb[0].mxu0
        %v1118 = vadd.f32 0.0, %v1117
        %v1119 = vpop.f32.mrb[0].mxu0
        %1120 = vmatprep.mubr.bf16.mxu0 0
        %1121 = vmatmul.mubr.bf16.gmra.mrb[0].mxu0 %v1013
        %v1122 = vpop.f32.mrb[0].mxu0
        %v1123 = vadd.f32 0.0, %v1122
        %v1124 = vpop.f32.mrb[0].mxu0
        %v1125 = vpop.f32.mrb[0].mxu0
        %v1126 = vadd.f32 0.0, %v1125
        %v1127 = vpop.f32.mrb[0].mxu0
        %1128 = vmatprep.mubr.bf16.mxu0 0
        %1129 = vmatmul.mubr.bf16.gmra.mrb[0].mxu0 %v1016
        %v1130 = vpop.f32.mrb[0].mxu0
        %v1131 = vadd.f32 0.0, %v1130
        %v1132 = vpop.f32.mrb[0].mxu0
        %v1133 = vpop.f32.mrb[0].mxu0
        %v1134 = vadd.f32 0.0, %v1133
        %v1135 = vpop.f32.mrb[0].mxu0
        %1136 = vmatprep.mubr.bf16.mxu0 0
        %1137 = vmatmul.mubr.bf16.gmra.mrb[0].mxu0 %v1019
        %v1138 = vpop.f32.mrb[0].mxu0
        %v1139 = vadd.f32 0.0, %v1138
        %v1140 = vpop.f32.mrb[0].mxu0
        %v1141 = vpop.f32.mrb[0].mxu0
        %v1142 = vadd.f32 0.0, %v1141
        %v1143 = vpop.f32.mrb[0].mxu0
        %1144 = vmatprep.mubr.bf16.mxu0 0
        %1145 = vmatmul.mubr.bf16.gmra.mrb[0].mxu0 %v1022
        %v1146 = vpop.f32.mrb[0].mxu0
        %v1147 = vadd.f32 0.0, %v1146
        %v1148 = vpop.f32.mrb[0].mxu0
        %v1149 = vpop.f32.mrb[0].mxu0
        %v1150 = vadd.f32 0.0, %v1149
        %v1151 = vpop.f32.mrb[0].mxu0
        %1152 = vmatprep.mubr.bf16.mxu0 0
        %1153 = vmatmul.mubr.bf16.gmra.mrb[0].mxu0 %v1025
        %v1154 = vpop.f32.mrb[0].mxu0
        %v1155 = vadd.f32 0.0, %v1154
        %v1156 = vpop.f32.mrb[0].mxu0
        %v1157 = vpop.f32.mrb[0].mxu0
        %v1158 = vadd.f32 0.0, %v1157
        %v1159 = vpop.f32.mrb[0].mxu0
        %1160 = vmatprep.mubr.bf16.mxu0 0
        %1161 = vmatmul.mubr.bf16.gmra.mrb[0].mxu0 %v1028
        %v1162 = vpop.f32.mrb[0].mxu0
        %v1163 = vadd.f32 0.0, %v1162
        %v1164 = vpop.f32.mrb[0].mxu0
        %v1165 = vpop.f32.mrb[0].mxu0
        %v1166 = vadd.f32 0.0, %v1165
        %v1167 = vpop.f32.mrb[0].mxu0
        %1168 = vmatprep.mubr.bf16.mxu0 0
        %1169 = vmatmul.mubr.bf16.gmra.mrb[0].mxu0 %v1031
        %v1170 = vpop.f32.mrb[0].mxu0
        %v1171 = vadd.f32 0.0, %v1170
        %v1172 = vpop.f32.mrb[0].mxu0
        %v1173 = vpop.f32.mrb[0].mxu0
        %v1174 = vadd.f32 0.0, %v1173
        %v1175 = vpop.f32.mrb[0].mxu0
        %1176 = vmatprep.mubr.bf16.mxu0 0
        %1177 = vmatmul.mubr.bf16.gmra.mrb[0].mxu0 %v1034
        %v1178 = vpop.f32.mrb[0].mxu0
        %v1179 = vadd.f32 0.0, %v1178
        %v1180 = vpop.f32.mrb[0].mxu0
        %v1181 = vpop.f32.mrb[0].mxu0
        %v1182 = vadd.f32 0.0, %v1181
        %v1183 = vpop.f32.mrb[0].mxu0
        %1184 = vmatprep.mubr.bf16.mxu0 0
        %1185 = vmatmul.mubr.bf16.gmra.mrb[0].mxu0 %v1037
        %v1186 = vpop.f32.mrb[0].mxu0
        %v1187 = vadd.f32 0.0, %v1186
        %v1188 = vpop.f32.mrb[0].mxu0
        %v1189 = vpop.f32.mrb[0].mxu0
        %v1190 = vadd.f32 0.0, %v1189
        %v1191 = vpop.f32.mrb[0].mxu0
        %1192 = vmatprep.mubr.bf16.mxu0 0
        %1193 = vmatmul.mubr.bf16.gmra.mrb[0].mxu0 %v1040
        %v1194 = vpop.f32.mrb[0].mxu0
        %v1195 = vadd.f32 0.0, %v1194
        %v1196 = vpop.f32.mrb[0].mxu0
        %v1197 = vpop.f32.mrb[0].mxu0
        %v1198 = vadd.f32 0.0, %v1197
        %v1199 = vpop.f32.mrb[0].mxu0
        %1200 = vmatprep.mubr.bf16.mxu0 0
        %1201 = vmatmul.mubr.bf16.gmra.mrb[0].mxu0 %v1043
        %v1202 = vpop.f32.mrb[0].mxu0
        %v1203 = vadd.f32 0.0, %v1202
        %v1204 = vpop.f32.mrb[0].mxu0
        %v1205 = vpop.f32.mrb[0].mxu0
        %v1206 = vadd.f32 0.0, %v1205
        %v1207 = vpop.f32.mrb[0].mxu0
        %1208 = vdwg.mxu0
        %v1209 = vadd.f32 %v788, %v1083
        %v1210 = vadd.f32 %v791, %v1086
        %v1211 = vadd.f32 %v796, %v1091
        %v1212 = vadd.f32 %v799, %v1094
        %v1213 = vadd.f32 %v804, %v1099
        %v1214 = vadd.f32 %v807, %v1102
        %v1215 = vadd.f32 %v812, %v1107
        %v1216 = vadd.f32 %v815, %v1110
        %v1217 = vadd.f32 %v820, %v1115
        %v1218 = vadd.f32 %v823, %v1118
        %v1219 = vadd.f32 %v828, %v1123
        %v1220 = vadd.f32 %v831, %v1126
        %v1221 = vadd.f32 %v836, %v1131
        %v1222 = vadd.f32 %v839, %v1134
        %v1223 = vadd.f32 %v844, %v1139
        %v1224 = vadd.f32 %v847, %v1142
        %v1225 = vadd.f32 %v852, %v1147
        %v1226 = vadd.f32 %v855, %v1150
        %v1227 = vadd.f32 %v860, %v1155
        %v1228 = vadd.f32 %v863, %v1158
        %v1229 = vadd.f32 %v868, %v1163
        %v1230 = vadd.f32 %v871, %v1166
        %v1231 = vadd.f32 %v876, %v1171
        %v1232 = vadd.f32 %v879, %v1174
        %v1233 = vadd.f32 %v884, %v1179
        %v1234 = vadd.f32 %v887, %v1182
        %v1235 = vadd.f32 %v892, %v1187
        %v1236 = vadd.f32 %v895, %v1190
        %v1237 = vadd.f32 %v900, %v1195
        %v1238 = vadd.f32 %v903, %v1198
        %v1239 = vadd.f32 %v908, %v1203
        %v1240 = vadd.f32 %v911, %v1206
        %s1241 = scalar_lea.vmem %s1, 6
        %v1242 = vld [vmem:[%s1241] sm:$0x3]
        %v1244 = vsel %vm501, %v301, 0
        %v1247 = vand.u32 %v1242, %v553
        %1249 = vmatprep.subr.bf16.mxu0 0
        %1250 = vmatpush1.bf16.msra.mxu0 %v1247
        %1251 = vmatprep.subr.bf16.mxu0 0
        %1252 = vmatpush1.bf16.msra.mxu0 0
        %1253 = vmatprep.subr.bf16.mxu0 0
        %1254 = vmatpush1.bf16.msra.mxu0 0
        %1255 = vmatprep.subr.bf16.mxu0 0
        %1256 = vmatpush1.bf16.msra.mxu0 0
        %1257 = vmatprep.subr.bf16.mxu0 0
        %1258 = vmatpush1.bf16.msra.mxu0 0
        %1259 = vmatprep.subr.bf16.mxu0 0
        %1260 = vmatpush1.bf16.msra.mxu0 0
        %1261 = vmatprep.subr.bf16.mxu0 0
        %1262 = vmatpush1.bf16.msra.mxu0 0
        %1263 = vmatprep.subr.bf16.mxu0 0
        %1264 = vmatpush1.bf16.msra.mxu0 0
        %1265 = vmatprep.subr.bf16.mxu0 0
        %1266 = vmatpush1.bf16.msra.mxu0 0
        %1267 = vmatprep.subr.bf16.mxu0 0
        %1268 = vmatpush1.bf16.msra.mxu0 0
        %1269 = vmatprep.subr.bf16.mxu0 0
        %1270 = vmatpush1.bf16.msra.mxu0 0
        %1271 = vmatprep.subr.bf16.mxu0 0
        %1272 = vmatpush1.bf16.msra.mxu0 0
        %1273 = vmatprep.subr.bf16.mxu0 0
        %1274 = vmatpush1.bf16.msra.mxu0 0
        %1275 = vmatprep.subr.bf16.mxu0 0
        %1276 = vmatpush1.bf16.msra.mxu0 0
        %1277 = vmatprep.subr.bf16.mxu0 0
        %1278 = vmatpush1.bf16.msra.mxu0 0
        %1279 = vmatprep.subr.bf16.mxu0 0
        %1280 = vmatpush1.bf16.msra.mxu0 0
        %1281 = vmatprep.mubr.bf16.mxu0 0
        %1282 = vmatmul.mubr.bf16.gmra.mrb[0].mxu0 %v720
        %v1283 = vpop.f32.mrb[0].mxu0
        %v1284 = vadd.f32 0.0, %v1283
        %v1285 = vpop.f32.mrb[0].mxu0
        %v1286 = vpop.f32.mrb[0].mxu0
        %v1287 = vadd.f32 0.0, %v1286
        %v1288 = vpop.f32.mrb[0].mxu0
        %1289 = vmatprep.mubr.bf16.mxu0 0
        %1290 = vmatmul.mubr.bf16.gmra.mrb[0].mxu0 %v722
        %v1291 = vpop.f32.mrb[0].mxu0
        %v1292 = vadd.f32 0.0, %v1291
        %v1293 = vpop.f32.mrb[0].mxu0
        %v1294 = vpop.f32.mrb[0].mxu0
        %v1295 = vadd.f32 0.0, %v1294
        %v1296 = vpop.f32.mrb[0].mxu0
        %1297 = vmatprep.mubr.bf16.mxu0 0
        %1298 = vmatmul.mubr.bf16.gmra.mrb[0].mxu0 %v724
        %v1299 = vpop.f32.mrb[0].mxu0
        %v1300 = vadd.f32 0.0, %v1299
        %v1301 = vpop.f32.mrb[0].mxu0
        %v1302 = vpop.f32.mrb[0].mxu0
        %v1303 = vadd.f32 0.0, %v1302
        %v1304 = vpop.f32.mrb[0].mxu0
        %1305 = vmatprep.mubr.bf16.mxu0 0
        %1306 = vmatmul.mubr.bf16.gmra.mrb[0].mxu0 %v726
        %v1307 = vpop.f32.mrb[0].mxu0
        %v1308 = vadd.f32 0.0, %v1307
        %v1309 = vpop.f32.mrb[0].mxu0
        %v1310 = vpop.f32.mrb[0].mxu0
        %v1311 = vadd.f32 0.0, %v1310
        %v1312 = vpop.f32.mrb[0].mxu0
        %1313 = vmatprep.mubr.bf16.mxu0 0
        %1314 = vmatmul.mubr.bf16.gmra.mrb[0].mxu0 %v728
        %v1315 = vpop.f32.mrb[0].mxu0
        %v1316 = vadd.f32 0.0, %v1315
        %v1317 = vpop.f32.mrb[0].mxu0
        %v1318 = vpop.f32.mrb[0].mxu0
        %v1319 = vadd.f32 0.0, %v1318
        %v1320 = vpop.f32.mrb[0].mxu0
        %1321 = vmatprep.mubr.bf16.mxu0 0
        %1322 = vmatmul.mubr.bf16.gmra.mrb[0].mxu0 %v730
        %v1323 = vpop.f32.mrb[0].mxu0
        %v1324 = vadd.f32 0.0, %v1323
        %v1325 = vpop.f32.mrb[0].mxu0
        %v1326 = vpop.f32.mrb[0].mxu0
        %v1327 = vadd.f32 0.0, %v1326
        %v1328 = vpop.f32.mrb[0].mxu0
        %1329 = vmatprep.mubr.bf16.mxu0 0
        %1330 = vmatmul.mubr.bf16.gmra.mrb[0].mxu0 %v732
        %v1331 = vpop.f32.mrb[0].mxu0
        %v1332 = vadd.f32 0.0, %v1331
        %v1333 = vpop.f32.mrb[0].mxu0
        %v1334 = vpop.f32.mrb[0].mxu0
        %v1335 = vadd.f32 0.0, %v1334
        %v1336 = vpop.f32.mrb[0].mxu0
        %1337 = vmatprep.mubr.bf16.mxu0 0
        %1338 = vmatmul.mubr.bf16.gmra.mrb[0].mxu0 %v734
        %v1339 = vpop.f32.mrb[0].mxu0
        %v1340 = vadd.f32 0.0, %v1339
        %v1341 = vpop.f32.mrb[0].mxu0
        %v1342 = vpop.f32.mrb[0].mxu0
        %v1343 = vadd.f32 0.0, %v1342
        %v1344 = vpop.f32.mrb[0].mxu0
        %1345 = vmatprep.mubr.bf16.mxu0 0
        %1346 = vmatmul.mubr.bf16.gmra.mrb[0].mxu0 %v736
        %v1347 = vpop.f32.mrb[0].mxu0
        %v1348 = vadd.f32 0.0, %v1347
        %v1349 = vpop.f32.mrb[0].mxu0
        %v1350 = vpop.f32.mrb[0].mxu0
        %v1351 = vadd.f32 0.0, %v1350
        %v1352 = vpop.f32.mrb[0].mxu0
        %1353 = vmatprep.mubr.bf16.mxu0 0
        %1354 = vmatmul.mubr.bf16.gmra.mrb[0].mxu0 %v738
        %v1355 = vpop.f32.mrb[0].mxu0
        %v1356 = vadd.f32 0.0, %v1355
        %v1357 = vpop.f32.mrb[0].mxu0
        %v1358 = vpop.f32.mrb[0].mxu0
        %v1359 = vadd.f32 0.0, %v1358
        %v1360 = vpop.f32.mrb[0].mxu0
        %1361 = vmatprep.mubr.bf16.mxu0 0
        %1362 = vmatmul.mubr.bf16.gmra.mrb[0].mxu0 %v740
        %v1363 = vpop.f32.mrb[0].mxu0
        %v1364 = vadd.f32 0.0, %v1363
        %v1365 = vpop.f32.mrb[0].mxu0
        %v1366 = vpop.f32.mrb[0].mxu0
        %v1367 = vadd.f32 0.0, %v1366
        %v1368 = vpop.f32.mrb[0].mxu0
        %1369 = vmatprep.mubr.bf16.mxu0 0
        %1370 = vmatmul.mubr.bf16.gmra.mrb[0].mxu0 %v742
        %v1371 = vpop.f32.mrb[0].mxu0
        %v1372 = vadd.f32 0.0, %v1371
        %v1373 = vpop.f32.mrb[0].mxu0
        %v1374 = vpop.f32.mrb[0].mxu0
        %v1375 = vadd.f32 0.0, %v1374
        %v1376 = vpop.f32.mrb[0].mxu0
        %1377 = vmatprep.mubr.bf16.mxu0 0
        %1378 = vmatmul.mubr.bf16.gmra.mrb[0].mxu0 %v744
        %v1379 = vpop.f32.mrb[0].mxu0
        %v1380 = vadd.f32 0.0, %v1379
        %v1381 = vpop.f32.mrb[0].mxu0
        %v1382 = vpop.f32.mrb[0].mxu0
        %v1383 = vadd.f32 0.0, %v1382
        %v1384 = vpop.f32.mrb[0].mxu0
        %1385 = vmatprep.mubr.bf16.mxu0 0
        %1386 = vmatmul.mubr.bf16.gmra.mrb[0].mxu0 %v746
        %v1387 = vpop.f32.mrb[0].mxu0
        %v1388 = vadd.f32 0.0, %v1387
        %v1389 = vpop.f32.mrb[0].mxu0
        %v1390 = vpop.f32.mrb[0].mxu0
        %v1391 = vadd.f32 0.0, %v1390
        %v1392 = vpop.f32.mrb[0].mxu0
        %1393 = vmatprep.mubr.bf16.mxu0 0
        %1394 = vmatmul.mubr.bf16.gmra.mrb[0].mxu0 %v748
        %v1395 = vpop.f32.mrb[0].mxu0
        %v1396 = vadd.f32 0.0, %v1395
        %v1397 = vpop.f32.mrb[0].mxu0
        %v1398 = vpop.f32.mrb[0].mxu0
        %v1399 = vadd.f32 0.0, %v1398
        %v1400 = vpop.f32.mrb[0].mxu0
        %1401 = vmatprep.mubr.bf16.mxu0 0
        %1402 = vmatmul.mubr.bf16.gmra.mrb[0].mxu0 %v1244
        %v1403 = vpop.f32.mrb[0].mxu0
        %v1404 = vadd.f32 0.0, %v1403
        %v1405 = vpop.f32.mrb[0].mxu0
        %v1406 = vpop.f32.mrb[0].mxu0
        %v1407 = vadd.f32 0.0, %v1406
        %v1408 = vpop.f32.mrb[0].mxu0
        %1409 = vdwg.mxu0
        %v1410 = vadd.f32 %v1209, %v1284
        %v1411 = vadd.f32 %v1210, %v1287
        %v1412 = vadd.f32 %v1211, %v1292
        %v1413 = vadd.f32 %v1212, %v1295
        %v1414 = vadd.f32 %v1213, %v1300
        %v1415 = vadd.f32 %v1214, %v1303
        %v1416 = vadd.f32 %v1215, %v1308
        %v1417 = vadd.f32 %v1216, %v1311
        %v1418 = vadd.f32 %v1217, %v1316
        %v1419 = vadd.f32 %v1218, %v1319
        %v1420 = vadd.f32 %v1219, %v1324
        %v1421 = vadd.f32 %v1220, %v1327
        %v1422 = vadd.f32 %v1221, %v1332
        %v1423 = vadd.f32 %v1222, %v1335
        %v1424 = vadd.f32 %v1223, %v1340
        %v1425 = vadd.f32 %v1224, %v1343
        %v1426 = vadd.f32 %v1225, %v1348
        %v1427 = vadd.f32 %v1226, %v1351
        %v1428 = vadd.f32 %v1227, %v1356
        %v1429 = vadd.f32 %v1228, %v1359
        %v1430 = vadd.f32 %v1229, %v1364
        %v1431 = vadd.f32 %v1230, %v1367
        %v1432 = vadd.f32 %v1231, %v1372
        %v1433 = vadd.f32 %v1232, %v1375
        %v1434 = vadd.f32 %v1233, %v1380
        %v1435 = vadd.f32 %v1234, %v1383
        %v1436 = vadd.f32 %v1235, %v1388
        %v1437 = vadd.f32 %v1236, %v1391
        %v1438 = vadd.f32 %v1237, %v1396
        %v1439 = vadd.f32 %v1238, %v1399
        %v1440 = vadd.f32 %v1239, %v1404
        %v1441 = vadd.f32 %v1240, %v1407
        %v1442 = vshrl.u32 %v301, 16
        %v1444 = vshll.u32 %v301, 16
        %v1446 = vrot.slane %v1444, 1
        %v1447 = vor.u32 %v1442, %v1446
        %v1449 = vshll.u32 %v302, 16
        %v1451 = vrot.slane %v1449, 1
        %v1452 = vsel %vm306, %v1447, %v1451
        %s1453 = scalar_lea.vmem %s1, 8
        %v1454 = vld [vmem:[%s1453] sm:$0x3]
        %v1456 = vsel %vm501, %v1452, 0
        %v1459 = vand.u32 %v1454, %v553
        %1461 = vmatprep.subr.bf16.mxu0 0
        %1462 = vmatpush1.bf16.msra.mxu0 %v1459
        %1463 = vmatprep.subr.bf16.mxu0 0
        %1464 = vmatpush1.bf16.msra.mxu0 0
        %1465 = vmatprep.subr.bf16.mxu0 0
        %1466 = vmatpush1.bf16.msra.mxu0 0
        %1467 = vmatprep.subr.bf16.mxu0 0
        %1468 = vmatpush1.bf16.msra.mxu0 0
        %1469 = vmatprep.subr.bf16.mxu0 0
        %1470 = vmatpush1.bf16.msra.mxu0 0
        %1471 = vmatprep.subr.bf16.mxu0 0
        %1472 = vmatpush1.bf16.msra.mxu0 0
        %1473 = vmatprep.subr.bf16.mxu0 0
        %1474 = vmatpush1.bf16.msra.mxu0 0
        %1475 = vmatprep.subr.bf16.mxu0 0
        %1476 = vmatpush1.bf16.msra.mxu0 0
        %1477 = vmatprep.subr.bf16.mxu0 0
        %1478 = vmatpush1.bf16.msra.mxu0 0
        %1479 = vmatprep.subr.bf16.mxu0 0
        %1480 = vmatpush1.bf16.msra.mxu0 0
        %1481 = vmatprep.subr.bf16.mxu0 0
        %1482 = vmatpush1.bf16.msra.mxu0 0
        %1483 = vmatprep.subr.bf16.mxu0 0
        %1484 = vmatpush1.bf16.msra.mxu0 0
        %1485 = vmatprep.subr.bf16.mxu0 0
        %1486 = vmatpush1.bf16.msra.mxu0 0
        %1487 = vmatprep.subr.bf16.mxu0 0
        %1488 = vmatpush1.bf16.msra.mxu0 0
        %1489 = vmatprep.subr.bf16.mxu0 0
        %1490 = vmatpush1.bf16.msra.mxu0 0
        %1491 = vmatprep.subr.bf16.mxu0 0
        %1492 = vmatpush1.bf16.msra.mxu0 0
        %1493 = vmatprep.mubr.bf16.mxu0 0
        %1494 = vmatmul.mubr.bf16.gmra.mrb[0].mxu0 %v506
        %v1495 = vpop.f32.mrb[0].mxu0
        %v1496 = vadd.f32 0.0, %v1495
        %v1497 = vpop.f32.mrb[0].mxu0
        %v1498 = vpop.f32.mrb[0].mxu0
        %v1499 = vadd.f32 0.0, %v1498
        %v1500 = vpop.f32.mrb[0].mxu0
        %1501 = vmatprep.mubr.bf16.mxu0 0
        %1502 = vmatmul.mubr.bf16.gmra.mrb[0].mxu0 %v509
        %v1503 = vpop.f32.mrb[0].mxu0
        %v1504 = vadd.f32 0.0, %v1503
        %v1505 = vpop.f32.mrb[0].mxu0
        %v1506 = vpop.f32.mrb[0].mxu0
        %v1507 = vadd.f32 0.0, %v1506
        %v1508 = vpop.f32.mrb[0].mxu0
        %1509 = vmatprep.mubr.bf16.mxu0 0
        %1510 = vmatmul.mubr.bf16.gmra.mrb[0].mxu0 %v512
        %v1511 = vpop.f32.mrb[0].mxu0
        %v1512 = vadd.f32 0.0, %v1511
        %v1513 = vpop.f32.mrb[0].mxu0
        %v1514 = vpop.f32.mrb[0].mxu0
        %v1515 = vadd.f32 0.0, %v1514
        %v1516 = vpop.f32.mrb[0].mxu0
        %1517 = vmatprep.mubr.bf16.mxu0 0
        %1518 = vmatmul.mubr.bf16.gmra.mrb[0].mxu0 %v515
        %v1519 = vpop.f32.mrb[0].mxu0
        %v1520 = vadd.f32 0.0, %v1519
        %v1521 = vpop.f32.mrb[0].mxu0
        %v1522 = vpop.f32.mrb[0].mxu0
        %v1523 = vadd.f32 0.0, %v1522
        %v1524 = vpop.f32.mrb[0].mxu0
        %1525 = vmatprep.mubr.bf16.mxu0 0
        %1526 = vmatmul.mubr.bf16.gmra.mrb[0].mxu0 %v518
        %v1527 = vpop.f32.mrb[0].mxu0
        %v1528 = vadd.f32 0.0, %v1527
        %v1529 = vpop.f32.mrb[0].mxu0
        %v1530 = vpop.f32.mrb[0].mxu0
        %v1531 = vadd.f32 0.0, %v1530
        %v1532 = vpop.f32.mrb[0].mxu0
        %1533 = vmatprep.mubr.bf16.mxu0 0
        %1534 = vmatmul.mubr.bf16.gmra.mrb[0].mxu0 %v521
        %v1535 = vpop.f32.mrb[0].mxu0
        %v1536 = vadd.f32 0.0, %v1535
        %v1537 = vpop.f32.mrb[0].mxu0
        %v1538 = vpop.f32.mrb[0].mxu0
        %v1539 = vadd.f32 0.0, %v1538
        %v1540 = vpop.f32.mrb[0].mxu0
        %1541 = vmatprep.mubr.bf16.mxu0 0
        %1542 = vmatmul.mubr.bf16.gmra.mrb[0].mxu0 %v524
        %v1543 = vpop.f32.mrb[0].mxu0
        %v1544 = vadd.f32 0.0, %v1543
        %v1545 = vpop.f32.mrb[0].mxu0
        %v1546 = vpop.f32.mrb[0].mxu0
        %v1547 = vadd.f32 0.0, %v1546
        %v1548 = vpop.f32.mrb[0].mxu0
        %1549 = vmatprep.mubr.bf16.mxu0 0
        %1550 = vmatmul.mubr.bf16.gmra.mrb[0].mxu0 %v527
        %v1551 = vpop.f32.mrb[0].mxu0
        %v1552 = vadd.f32 0.0, %v1551
        %v1553 = vpop.f32.mrb[0].mxu0
        %v1554 = vpop.f32.mrb[0].mxu0
        %v1555 = vadd.f32 0.0, %v1554
        %v1556 = vpop.f32.mrb[0].mxu0
        %1557 = vmatprep.mubr.bf16.mxu0 0
        %1558 = vmatmul.mubr.bf16.gmra.mrb[0].mxu0 %v530
        %v1559 = vpop.f32.mrb[0].mxu0
        %v1560 = vadd.f32 0.0, %v1559
        %v1561 = vpop.f32.mrb[0].mxu0
        %v1562 = vpop.f32.mrb[0].mxu0
        %v1563 = vadd.f32 0.0, %v1562
        %v1564 = vpop.f32.mrb[0].mxu0
        %1565 = vmatprep.mubr.bf16.mxu0 0
        %1566 = vmatmul.mubr.bf16.gmra.mrb[0].mxu0 %v533
        %v1567 = vpop.f32.mrb[0].mxu0
        %v1568 = vadd.f32 0.0, %v1567
        %v1569 = vpop.f32.mrb[0].mxu0
        %v1570 = vpop.f32.mrb[0].mxu0
        %v1571 = vadd.f32 0.0, %v1570
        %v1572 = vpop.f32.mrb[0].mxu0
        %1573 = vmatprep.mubr.bf16.mxu0 0
        %1574 = vmatmul.mubr.bf16.gmra.mrb[0].mxu0 %v536
        %v1575 = vpop.f32.mrb[0].mxu0
        %v1576 = vadd.f32 0.0, %v1575
        %v1577 = vpop.f32.mrb[0].mxu0
        %v1578 = vpop.f32.mrb[0].mxu0
        %v1579 = vadd.f32 0.0, %v1578
        %v1580 = vpop.f32.mrb[0].mxu0
        %1581 = vmatprep.mubr.bf16.mxu0 0
        %1582 = vmatmul.mubr.bf16.gmra.mrb[0].mxu0 %v539
        %v1583 = vpop.f32.mrb[0].mxu0
        %v1584 = vadd.f32 0.0, %v1583
        %v1585 = vpop.f32.mrb[0].mxu0
        %v1586 = vpop.f32.mrb[0].mxu0
        %v1587 = vadd.f32 0.0, %v1586
        %v1588 = vpop.f32.mrb[0].mxu0
        %1589 = vmatprep.mubr.bf16.mxu0 0
        %1590 = vmatmul.mubr.bf16.gmra.mrb[0].mxu0 %v542
        %v1591 = vpop.f32.mrb[0].mxu0
        %v1592 = vadd.f32 0.0, %v1591
        %v1593 = vpop.f32.mrb[0].mxu0
        %v1594 = vpop.f32.mrb[0].mxu0
        %v1595 = vadd.f32 0.0, %v1594
        %v1596 = vpop.f32.mrb[0].mxu0
        %1597 = vmatprep.mubr.bf16.mxu0 0
        %1598 = vmatmul.mubr.bf16.gmra.mrb[0].mxu0 %v545
        %v1599 = vpop.f32.mrb[0].mxu0
        %v1600 = vadd.f32 0.0, %v1599
        %v1601 = vpop.f32.mrb[0].mxu0
        %v1602 = vpop.f32.mrb[0].mxu0
        %v1603 = vadd.f32 0.0, %v1602
        %v1604 = vpop.f32.mrb[0].mxu0
        %1605 = vmatprep.mubr.bf16.mxu0 0
        %1606 = vmatmul.mubr.bf16.gmra.mrb[0].mxu0 %v548
        %v1607 = vpop.f32.mrb[0].mxu0
        %v1608 = vadd.f32 0.0, %v1607
        %v1609 = vpop.f32.mrb[0].mxu0
        %v1610 = vpop.f32.mrb[0].mxu0
        %v1611 = vadd.f32 0.0, %v1610
        %v1612 = vpop.f32.mrb[0].mxu0
        %1613 = vmatprep.mubr.bf16.mxu0 0
        %1614 = vmatmul.mubr.bf16.gmra.mrb[0].mxu0 %v1456
        %v1615 = vpop.f32.mrb[0].mxu0
        %v1616 = vadd.f32 0.0, %v1615
        %v1617 = vpop.f32.mrb[0].mxu0
        %v1618 = vpop.f32.mrb[0].mxu0
        %v1619 = vadd.f32 0.0, %v1618
        %v1620 = vpop.f32.mrb[0].mxu0
        %1621 = vdwg.mxu0
        %v1622 = vadd.f32 %v1410, %v1496
        %v1623 = vadd.f32 %v1411, %v1499
        %v1624 = vadd.f32 %v1412, %v1504
        %v1625 = vadd.f32 %v1413, %v1507
        %v1626 = vadd.f32 %v1414, %v1512
        %v1627 = vadd.f32 %v1415, %v1515
        %v1628 = vadd.f32 %v1416, %v1520
        %v1629 = vadd.f32 %v1417, %v1523
        %v1630 = vadd.f32 %v1418, %v1528
        %v1631 = vadd.f32 %v1419, %v1531
        %v1632 = vadd.f32 %v1420, %v1536
        %v1633 = vadd.f32 %v1421, %v1539
        %v1634 = vadd.f32 %v1422, %v1544
        %v1635 = vadd.f32 %v1423, %v1547
        %v1636 = vadd.f32 %v1424, %v1552
        %v1637 = vadd.f32 %v1425, %v1555
        %v1638 = vadd.f32 %v1426, %v1560
        %v1639 = vadd.f32 %v1427, %v1563
        %v1640 = vadd.f32 %v1428, %v1568
        %v1641 = vadd.f32 %v1429, %v1571
        %v1642 = vadd.f32 %v1430, %v1576
        %v1643 = vadd.f32 %v1431, %v1579
        %v1644 = vadd.f32 %v1432, %v1584
        %v1645 = vadd.f32 %v1433, %v1587
        %v1646 = vadd.f32 %v1434, %v1592
        %v1647 = vadd.f32 %v1435, %v1595
        %v1648 = vadd.f32 %v1436, %v1600
        %v1649 = vadd.f32 %v1437, %v1603
        %v1650 = vadd.f32 %v1438, %v1608
        %v1651 = vadd.f32 %v1439, %v1611
        %v1652 = vadd.f32 %v1440, %v1616
        %v1653 = vadd.f32 %v1441, %v1619
        %v1656 = vrot.slane %v301, 1
        %v1657 = vrot.slane %v302, 1
        %v1658 = vsel %vm946, %v1656, %v1657
        %s1659 = scalar_lea.vmem %s1, 10
        %v1660 = vld [vmem:[%s1659] sm:$0x3]
        %v1662 = vsel %vm501, %v1658, 0
        %v1665 = vand.u32 %v1660, %v553
        %1667 = vmatprep.subr.bf16.mxu0 0
        %1668 = vmatpush1.bf16.msra.mxu0 %v1665
        %1669 = vmatprep.subr.bf16.mxu0 0
        %1670 = vmatpush1.bf16.msra.mxu0 0
        %1671 = vmatprep.subr.bf16.mxu0 0
        %1672 = vmatpush1.bf16.msra.mxu0 0
        %1673 = vmatprep.subr.bf16.mxu0 0
        %1674 = vmatpush1.bf16.msra.mxu0 0
        %1675 = vmatprep.subr.bf16.mxu0 0
        %1676 = vmatpush1.bf16.msra.mxu0 0
        %1677 = vmatprep.subr.bf16.mxu0 0
        %1678 = vmatpush1.bf16.msra.mxu0 0
        %1679 = vmatprep.subr.bf16.mxu0 0
        %1680 = vmatpush1.bf16.msra.mxu0 0
        %1681 = vmatprep.subr.bf16.mxu0 0
        %1682 = vmatpush1.bf16.msra.mxu0 0
        %1683 = vmatprep.subr.bf16.mxu0 0
        %1684 = vmatpush1.bf16.msra.mxu0 0
        %1685 = vmatprep.subr.bf16.mxu0 0
        %1686 = vmatpush1.bf16.msra.mxu0 0
        %1687 = vmatprep.subr.bf16.mxu0 0
        %1688 = vmatpush1.bf16.msra.mxu0 0
        %1689 = vmatprep.subr.bf16.mxu0 0
        %1690 = vmatpush1.bf16.msra.mxu0 0
        %1691 = vmatprep.subr.bf16.mxu0 0
        %1692 = vmatpush1.bf16.msra.mxu0 0
        %1693 = vmatprep.subr.bf16.mxu0 0
        %1694 = vmatpush1.bf16.msra.mxu0 0
        %1695 = vmatprep.subr.bf16.mxu0 0
        %1696 = vmatpush1.bf16.msra.mxu0 0
        %1697 = vmatprep.subr.bf16.mxu0 0
        %1698 = vmatpush1.bf16.msra.mxu0 0
        %1699 = vmatprep.mubr.bf16.mxu0 0
        %1700 = vmatmul.mubr.bf16.gmra.mrb[0].mxu0 %v1001
        %v1701 = vpop.f32.mrb[0].mxu0
        %v1702 = vadd.f32 0.0, %v1701
        %v1703 = vpop.f32.mrb[0].mxu0
        %v1704 = vpop.f32.mrb[0].mxu0
        %v1705 = vadd.f32 0.0, %v1704
        %v1706 = vpop.f32.mrb[0].mxu0
        %1707 = vmatprep.mubr.bf16.mxu0 0
        %1708 = vmatmul.mubr.bf16.gmra.mrb[0].mxu0 %v1004
        %v1709 = vpop.f32.mrb[0].mxu0
        %v1710 = vadd.f32 0.0, %v1709
        %v1711 = vpop.f32.mrb[0].mxu0
        %v1712 = vpop.f32.mrb[0].mxu0
        %v1713 = vadd.f32 0.0, %v1712
        %v1714 = vpop.f32.mrb[0].mxu0
        %1715 = vmatprep.mubr.bf16.mxu0 0
        %1716 = vmatmul.mubr.bf16.gmra.mrb[0].mxu0 %v1007
        %v1717 = vpop.f32.mrb[0].mxu0
        %v1718 = vadd.f32 0.0, %v1717
        %v1719 = vpop.f32.mrb[0].mxu0
        %v1720 = vpop.f32.mrb[0].mxu0
        %v1721 = vadd.f32 0.0, %v1720
        %v1722 = vpop.f32.mrb[0].mxu0
        %1723 = vmatprep.mubr.bf16.mxu0 0
        %1724 = vmatmul.mubr.bf16.gmra.mrb[0].mxu0 %v1010
        %v1725 = vpop.f32.mrb[0].mxu0
        %v1726 = vadd.f32 0.0, %v1725
        %v1727 = vpop.f32.mrb[0].mxu0
        %v1728 = vpop.f32.mrb[0].mxu0
        %v1729 = vadd.f32 0.0, %v1728
        %v1730 = vpop.f32.mrb[0].mxu0
        %1731 = vmatprep.mubr.bf16.mxu0 0
        %1732 = vmatmul.mubr.bf16.gmra.mrb[0].mxu0 %v1013
        %v1733 = vpop.f32.mrb[0].mxu0
        %v1734 = vadd.f32 0.0, %v1733
        %v1735 = vpop.f32.mrb[0].mxu0
        %v1736 = vpop.f32.mrb[0].mxu0
        %v1737 = vadd.f32 0.0, %v1736
        %v1738 = vpop.f32.mrb[0].mxu0
        %1739 = vmatprep.mubr.bf16.mxu0 0
        %1740 = vmatmul.mubr.bf16.gmra.mrb[0].mxu0 %v1016
        %v1741 = vpop.f32.mrb[0].mxu0
        %v1742 = vadd.f32 0.0, %v1741
        %v1743 = vpop.f32.mrb[0].mxu0
        %v1744 = vpop.f32.mrb[0].mxu0
        %v1745 = vadd.f32 0.0, %v1744
        %v1746 = vpop.f32.mrb[0].mxu0
        %1747 = vmatprep.mubr.bf16.mxu0 0
        %1748 = vmatmul.mubr.bf16.gmra.mrb[0].mxu0 %v1019
        %v1749 = vpop.f32.mrb[0].mxu0
        %v1750 = vadd.f32 0.0, %v1749
        %v1751 = vpop.f32.mrb[0].mxu0
        %v1752 = vpop.f32.mrb[0].mxu0
        %v1753 = vadd.f32 0.0, %v1752
        %v1754 = vpop.f32.mrb[0].mxu0
        %1755 = vmatprep.mubr.bf16.mxu0 0
        %1756 = vmatmul.mubr.bf16.gmra.mrb[0].mxu0 %v1022
        %v1757 = vpop.f32.mrb[0].mxu0
        %v1758 = vadd.f32 0.0, %v1757
        %v1759 = vpop.f32.mrb[0].mxu0
        %v1760 = vpop.f32.mrb[0].mxu0
        %v1761 = vadd.f32 0.0, %v1760
        %v1762 = vpop.f32.mrb[0].mxu0
        %1763 = vmatprep.mubr.bf16.mxu0 0
        %1764 = vmatmul.mubr.bf16.gmra.mrb[0].mxu0 %v1025
        %v1765 = vpop.f32.mrb[0].mxu0
        %v1766 = vadd.f32 0.0, %v1765
        %v1767 = vpop.f32.mrb[0].mxu0
        %v1768 = vpop.f32.mrb[0].mxu0
        %v1769 = vadd.f32 0.0, %v1768
        %v1770 = vpop.f32.mrb[0].mxu0
        %1771 = vmatprep.mubr.bf16.mxu0 0
        %1772 = vmatmul.mubr.bf16.gmra.mrb[0].mxu0 %v1028
        %v1773 = vpop.f32.mrb[0].mxu0
        %v1774 = vadd.f32 0.0, %v1773
        %v1775 = vpop.f32.mrb[0].mxu0
        %v1776 = vpop.f32.mrb[0].mxu0
        %v1777 = vadd.f32 0.0, %v1776
        %v1778 = vpop.f32.mrb[0].mxu0
        %1779 = vmatprep.mubr.bf16.mxu0 0
        %1780 = vmatmul.mubr.bf16.gmra.mrb[0].mxu0 %v1031
        %v1781 = vpop.f32.mrb[0].mxu0
        %v1782 = vadd.f32 0.0, %v1781
        %v1783 = vpop.f32.mrb[0].mxu0
        %v1784 = vpop.f32.mrb[0].mxu0
        %v1785 = vadd.f32 0.0, %v1784
        %v1786 = vpop.f32.mrb[0].mxu0
        %1787 = vmatprep.mubr.bf16.mxu0 0
        %1788 = vmatmul.mubr.bf16.gmra.mrb[0].mxu0 %v1034
        %v1789 = vpop.f32.mrb[0].mxu0
        %v1790 = vadd.f32 0.0, %v1789
        %v1791 = vpop.f32.mrb[0].mxu0
        %v1792 = vpop.f32.mrb[0].mxu0
        %v1793 = vadd.f32 0.0, %v1792
        %v1794 = vpop.f32.mrb[0].mxu0
        %1795 = vmatprep.mubr.bf16.mxu0 0
        %1796 = vmatmul.mubr.bf16.gmra.mrb[0].mxu0 %v1037
        %v1797 = vpop.f32.mrb[0].mxu0
        %v1798 = vadd.f32 0.0, %v1797
        %v1799 = vpop.f32.mrb[0].mxu0
        %v1800 = vpop.f32.mrb[0].mxu0
        %v1801 = vadd.f32 0.0, %v1800
        %v1802 = vpop.f32.mrb[0].mxu0
        %1803 = vmatprep.mubr.bf16.mxu0 0
        %1804 = vmatmul.mubr.bf16.gmra.mrb[0].mxu0 %v1040
        %v1805 = vpop.f32.mrb[0].mxu0
        %v1806 = vadd.f32 0.0, %v1805
        %v1807 = vpop.f32.mrb[0].mxu0
        %v1808 = vpop.f32.mrb[0].mxu0
        %v1809 = vadd.f32 0.0, %v1808
        %v1810 = vpop.f32.mrb[0].mxu0
        %1811 = vmatprep.mubr.bf16.mxu0 0
        %1812 = vmatmul.mubr.bf16.gmra.mrb[0].mxu0 %v1043
        %v1813 = vpop.f32.mrb[0].mxu0
        %v1814 = vadd.f32 0.0, %v1813
        %v1815 = vpop.f32.mrb[0].mxu0
        %v1816 = vpop.f32.mrb[0].mxu0
        %v1817 = vadd.f32 0.0, %v1816
        %v1818 = vpop.f32.mrb[0].mxu0
        %1819 = vmatprep.mubr.bf16.mxu0 0
        %1820 = vmatmul.mubr.bf16.gmra.mrb[0].mxu0 %v1662
        %v1821 = vpop.f32.mrb[0].mxu0
        %v1822 = vadd.f32 0.0, %v1821
        %v1823 = vpop.f32.mrb[0].mxu0
        %v1824 = vpop.f32.mrb[0].mxu0
        %v1825 = vadd.f32 0.0, %v1824
        %v1826 = vpop.f32.mrb[0].mxu0
        %1827 = vdwg.mxu0
        %v1828 = vadd.f32 %v1622, %v1702
        %v1829 = vadd.f32 %v1623, %v1705
        %v1830 = vadd.f32 %v1624, %v1710
        %v1831 = vadd.f32 %v1625, %v1713
        %v1832 = vadd.f32 %v1626, %v1718
        %v1833 = vadd.f32 %v1627, %v1721
        %v1834 = vadd.f32 %v1628, %v1726
        %v1835 = vadd.f32 %v1629, %v1729
        %v1836 = vadd.f32 %v1630, %v1734
        %v1837 = vadd.f32 %v1631, %v1737
        %v1838 = vadd.f32 %v1632, %v1742
        %v1839 = vadd.f32 %v1633, %v1745
        %v1840 = vadd.f32 %v1634, %v1750
        %v1841 = vadd.f32 %v1635, %v1753
        %v1842 = vadd.f32 %v1636, %v1758
        %v1843 = vadd.f32 %v1637, %v1761
        %v1844 = vadd.f32 %v1638, %v1766
        %v1845 = vadd.f32 %v1639, %v1769
        %v1846 = vadd.f32 %v1640, %v1774
        %v1847 = vadd.f32 %v1641, %v1777
        %v1848 = vadd.f32 %v1642, %v1782
        %v1849 = vadd.f32 %v1643, %v1785
        %v1850 = vadd.f32 %v1644, %v1790
        %v1851 = vadd.f32 %v1645, %v1793
        %v1852 = vadd.f32 %v1646, %v1798
        %v1853 = vadd.f32 %v1647, %v1801
        %v1854 = vadd.f32 %v1648, %v1806
        %v1855 = vadd.f32 %v1649, %v1809
        %v1856 = vadd.f32 %v1650, %v1814
        %v1857 = vadd.f32 %v1651, %v1817
        %v1858 = vadd.f32 %v1652, %v1822
        %v1859 = vadd.f32 %v1653, %v1825
        %s1860 = scalar_lea.vmem %s1, 12
        %v1861 = vld [vmem:[%s1860] sm:$0x3]
        %v1863 = vsel %vm501, %v303, 0
        %v1866 = vand.u32 %v1861, %v553
        %1868 = vmatprep.subr.bf16.mxu0 0
        %1869 = vmatpush1.bf16.msra.mxu0 %v1866
        %1870 = vmatprep.subr.bf16.mxu0 0
        %1871 = vmatpush1.bf16.msra.mxu0 0
        %1872 = vmatprep.subr.bf16.mxu0 0
        %1873 = vmatpush1.bf16.msra.mxu0 0
        %1874 = vmatprep.subr.bf16.mxu0 0
        %1875 = vmatpush1.bf16.msra.mxu0 0
        %1876 = vmatprep.subr.bf16.mxu0 0
        %1877 = vmatpush1.bf16.msra.mxu0 0
        %1878 = vmatprep.subr.bf16.mxu0 0
        %1879 = vmatpush1.bf16.msra.mxu0 0
        %1880 = vmatprep.subr.bf16.mxu0 0
        %1881 = vmatpush1.bf16.msra.mxu0 0
        %1882 = vmatprep.subr.bf16.mxu0 0
        %1883 = vmatpush1.bf16.msra.mxu0 0
        %1884 = vmatprep.subr.bf16.mxu0 0
        %1885 = vmatpush1.bf16.msra.mxu0 0
        %1886 = vmatprep.subr.bf16.mxu0 0
        %1887 = vmatpush1.bf16.msra.mxu0 0
        %1888 = vmatprep.subr.bf16.mxu0 0
        %1889 = vmatpush1.bf16.msra.mxu0 0
        %1890 = vmatprep.subr.bf16.mxu0 0
        %1891 = vmatpush1.bf16.msra.mxu0 0
        %1892 = vmatprep.subr.bf16.mxu0 0
        %1893 = vmatpush1.bf16.msra.mxu0 0
        %1894 = vmatprep.subr.bf16.mxu0 0
        %1895 = vmatpush1.bf16.msra.mxu0 0
        %1896 = vmatprep.subr.bf16.mxu0 0
        %1897 = vmatpush1.bf16.msra.mxu0 0
        %1898 = vmatprep.subr.bf16.mxu0 0
        %1899 = vmatpush1.bf16.msra.mxu0 0
        %1900 = vmatprep.mubr.bf16.mxu0 0
        %1901 = vmatmul.mubr.bf16.gmra.mrb[0].mxu0 %v722
        %v1902 = vpop.f32.mrb[0].mxu0
        %v1903 = vadd.f32 0.0, %v1902
        %v1904 = vpop.f32.mrb[0].mxu0
        %v1905 = vpop.f32.mrb[0].mxu0
        %v1906 = vadd.f32 0.0, %v1905
        %v1907 = vpop.f32.mrb[0].mxu0
        %1908 = vmatprep.mubr.bf16.mxu0 0
        %1909 = vmatmul.mubr.bf16.gmra.mrb[0].mxu0 %v724
        %v1910 = vpop.f32.mrb[0].mxu0
        %v1911 = vadd.f32 0.0, %v1910
        %v1912 = vpop.f32.mrb[0].mxu0
        %v1913 = vpop.f32.mrb[0].mxu0
        %v1914 = vadd.f32 0.0, %v1913
        %v1915 = vpop.f32.mrb[0].mxu0
        %1916 = vmatprep.mubr.bf16.mxu0 0
        %1917 = vmatmul.mubr.bf16.gmra.mrb[0].mxu0 %v726
        %v1918 = vpop.f32.mrb[0].mxu0
        %v1919 = vadd.f32 0.0, %v1918
        %v1920 = vpop.f32.mrb[0].mxu0
        %v1921 = vpop.f32.mrb[0].mxu0
        %v1922 = vadd.f32 0.0, %v1921
        %v1923 = vpop.f32.mrb[0].mxu0
        %1924 = vmatprep.mubr.bf16.mxu0 0
        %1925 = vmatmul.mubr.bf16.gmra.mrb[0].mxu0 %v728
        %v1926 = vpop.f32.mrb[0].mxu0
        %v1927 = vadd.f32 0.0, %v1926
        %v1928 = vpop.f32.mrb[0].mxu0
        %v1929 = vpop.f32.mrb[0].mxu0
        %v1930 = vadd.f32 0.0, %v1929
        %v1931 = vpop.f32.mrb[0].mxu0
        %1932 = vmatprep.mubr.bf16.mxu0 0
        %1933 = vmatmul.mubr.bf16.gmra.mrb[0].mxu0 %v730
        %v1934 = vpop.f32.mrb[0].mxu0
        %v1935 = vadd.f32 0.0, %v1934
        %v1936 = vpop.f32.mrb[0].mxu0
        %v1937 = vpop.f32.mrb[0].mxu0
        %v1938 = vadd.f32 0.0, %v1937
        %v1939 = vpop.f32.mrb[0].mxu0
        %1940 = vmatprep.mubr.bf16.mxu0 0
        %1941 = vmatmul.mubr.bf16.gmra.mrb[0].mxu0 %v732
        %v1942 = vpop.f32.mrb[0].mxu0
        %v1943 = vadd.f32 0.0, %v1942
        %v1944 = vpop.f32.mrb[0].mxu0
        %v1945 = vpop.f32.mrb[0].mxu0
        %v1946 = vadd.f32 0.0, %v1945
        %v1947 = vpop.f32.mrb[0].mxu0
        %1948 = vmatprep.mubr.bf16.mxu0 0
        %1949 = vmatmul.mubr.bf16.gmra.mrb[0].mxu0 %v734
        %v1950 = vpop.f32.mrb[0].mxu0
        %v1951 = vadd.f32 0.0, %v1950
        %v1952 = vpop.f32.mrb[0].mxu0
        %v1953 = vpop.f32.mrb[0].mxu0
        %v1954 = vadd.f32 0.0, %v1953
        %v1955 = vpop.f32.mrb[0].mxu0
        %1956 = vmatprep.mubr.bf16.mxu0 0
        %1957 = vmatmul.mubr.bf16.gmra.mrb[0].mxu0 %v736
        %v1958 = vpop.f32.mrb[0].mxu0
        %v1959 = vadd.f32 0.0, %v1958
        %v1960 = vpop.f32.mrb[0].mxu0
        %v1961 = vpop.f32.mrb[0].mxu0
        %v1962 = vadd.f32 0.0, %v1961
        %v1963 = vpop.f32.mrb[0].mxu0
        %1964 = vmatprep.mubr.bf16.mxu0 0
        %1965 = vmatmul.mubr.bf16.gmra.mrb[0].mxu0 %v738
        %v1966 = vpop.f32.mrb[0].mxu0
        %v1967 = vadd.f32 0.0, %v1966
        %v1968 = vpop.f32.mrb[0].mxu0
        %v1969 = vpop.f32.mrb[0].mxu0
        %v1970 = vadd.f32 0.0, %v1969
        %v1971 = vpop.f32.mrb[0].mxu0
        %1972 = vmatprep.mubr.bf16.mxu0 0
        %1973 = vmatmul.mubr.bf16.gmra.mrb[0].mxu0 %v740
        %v1974 = vpop.f32.mrb[0].mxu0
        %v1975 = vadd.f32 0.0, %v1974
        %v1976 = vpop.f32.mrb[0].mxu0
        %v1977 = vpop.f32.mrb[0].mxu0
        %v1978 = vadd.f32 0.0, %v1977
        %v1979 = vpop.f32.mrb[0].mxu0
        %1980 = vmatprep.mubr.bf16.mxu0 0
        %1981 = vmatmul.mubr.bf16.gmra.mrb[0].mxu0 %v742
        %v1982 = vpop.f32.mrb[0].mxu0
        %v1983 = vadd.f32 0.0, %v1982
        %v1984 = vpop.f32.mrb[0].mxu0
        %v1985 = vpop.f32.mrb[0].mxu0
        %v1986 = vadd.f32 0.0, %v1985
        %v1987 = vpop.f32.mrb[0].mxu0
        %1988 = vmatprep.mubr.bf16.mxu0 0
        %1989 = vmatmul.mubr.bf16.gmra.mrb[0].mxu0 %v744
        %v1990 = vpop.f32.mrb[0].mxu0
        %v1991 = vadd.f32 0.0, %v1990
        %v1992 = vpop.f32.mrb[0].mxu0
        %v1993 = vpop.f32.mrb[0].mxu0
        %v1994 = vadd.f32 0.0, %v1993
        %v1995 = vpop.f32.mrb[0].mxu0
        %1996 = vmatprep.mubr.bf16.mxu0 0
        %1997 = vmatmul.mubr.bf16.gmra.mrb[0].mxu0 %v746
        %v1998 = vpop.f32.mrb[0].mxu0
        %v1999 = vadd.f32 0.0, %v1998
        %v2000 = vpop.f32.mrb[0].mxu0
        %v2001 = vpop.f32.mrb[0].mxu0
        %v2002 = vadd.f32 0.0, %v2001
        %v2003 = vpop.f32.mrb[0].mxu0
        %2004 = vmatprep.mubr.bf16.mxu0 0
        %2005 = vmatmul.mubr.bf16.gmra.mrb[0].mxu0 %v748
        %v2006 = vpop.f32.mrb[0].mxu0
        %v2007 = vadd.f32 0.0, %v2006
        %v2008 = vpop.f32.mrb[0].mxu0
        %v2009 = vpop.f32.mrb[0].mxu0
        %v2010 = vadd.f32 0.0, %v2009
        %v2011 = vpop.f32.mrb[0].mxu0
        %2012 = vmatprep.mubr.bf16.mxu0 0
        %2013 = vmatmul.mubr.bf16.gmra.mrb[0].mxu0 %v1244
        %v2014 = vpop.f32.mrb[0].mxu0
        %v2015 = vadd.f32 0.0, %v2014
        %v2016 = vpop.f32.mrb[0].mxu0
        %v2017 = vpop.f32.mrb[0].mxu0
        %v2018 = vadd.f32 0.0, %v2017
        %v2019 = vpop.f32.mrb[0].mxu0
        %2020 = vmatprep.mubr.bf16.mxu0 0
        %2021 = vmatmul.mubr.bf16.gmra.mrb[0].mxu0 %v1863
        %v2022 = vpop.f32.mrb[0].mxu0
        %v2023 = vadd.f32 0.0, %v2022
        %v2024 = vpop.f32.mrb[0].mxu0
        %v2025 = vpop.f32.mrb[0].mxu0
        %v2026 = vadd.f32 0.0, %v2025
        %v2027 = vpop.f32.mrb[0].mxu0
        %2028 = vdwg.mxu0
        %v2029 = vadd.f32 %v1828, %v1903
        %v2030 = vadd.f32 %v1829, %v1906
        %v2031 = vadd.f32 %v1830, %v1911
        %v2032 = vadd.f32 %v1831, %v1914
        %v2033 = vadd.f32 %v1832, %v1919
        %v2034 = vadd.f32 %v1833, %v1922
        %v2035 = vadd.f32 %v1834, %v1927
        %v2036 = vadd.f32 %v1835, %v1930
        %v2037 = vadd.f32 %v1836, %v1935
        %v2038 = vadd.f32 %v1837, %v1938
        %v2039 = vadd.f32 %v1838, %v1943
        %v2040 = vadd.f32 %v1839, %v1946
        %v2041 = vadd.f32 %v1840, %v1951
        %v2042 = vadd.f32 %v1841, %v1954
        %v2043 = vadd.f32 %v1842, %v1959
        %v2044 = vadd.f32 %v1843, %v1962
        %v2045 = vadd.f32 %v1844, %v1967
        %v2046 = vadd.f32 %v1845, %v1970
        %v2047 = vadd.f32 %v1846, %v1975
        %v2048 = vadd.f32 %v1847, %v1978
        %v2049 = vadd.f32 %v1848, %v1983
        %v2050 = vadd.f32 %v1849, %v1986
        %v2051 = vadd.f32 %v1850, %v1991
        %v2052 = vadd.f32 %v1851, %v1994
        %v2053 = vadd.f32 %v1852, %v1999
        %v2054 = vadd.f32 %v1853, %v2002
        %v2055 = vadd.f32 %v1854, %v2007
        %v2056 = vadd.f32 %v1855, %v2010
        %v2057 = vadd.f32 %v1856, %v2015
        %v2058 = vadd.f32 %v1857, %v2018
        %v2059 = vadd.f32 %v1858, %v2023
        %v2060 = vadd.f32 %v1859, %v2026
        %v2061 = vshrl.u32 %v303, 16
        %v2063 = vshll.u32 %v303, 16
        %v2065 = vrot.slane %v2063, 1
        %v2066 = vor.u32 %v2061, %v2065
        %v2068 = vshll.u32 %v304, 16
        %v2070 = vrot.slane %v2068, 1
        %v2071 = vsel %vm306, %v2066, %v2070
        %s2072 = scalar_lea.vmem %s1, 14
        %v2073 = vld [vmem:[%s2072] sm:$0x3]
        %v2075 = vsel %vm501, %v2071, 0
        %v2078 = vand.u32 %v2073, %v553
        %2080 = vmatprep.subr.bf16.mxu0 0
        %2081 = vmatpush1.bf16.msra.mxu0 %v2078
        %2082 = vmatprep.subr.bf16.mxu0 0
        %2083 = vmatpush1.bf16.msra.mxu0 0
        %2084 = vmatprep.subr.bf16.mxu0 0
        %2085 = vmatpush1.bf16.msra.mxu0 0
        %2086 = vmatprep.subr.bf16.mxu0 0
        %2087 = vmatpush1.bf16.msra.mxu0 0
        %2088 = vmatprep.subr.bf16.mxu0 0
        %2089 = vmatpush1.bf16.msra.mxu0 0
        %2090 = vmatprep.subr.bf16.mxu0 0
        %2091 = vmatpush1.bf16.msra.mxu0 0
        %2092 = vmatprep.subr.bf16.mxu0 0
        %2093 = vmatpush1.bf16.msra.mxu0 0
        %2094 = vmatprep.subr.bf16.mxu0 0
        %2095 = vmatpush1.bf16.msra.mxu0 0
        %2096 = vmatprep.subr.bf16.mxu0 0
        %2097 = vmatpush1.bf16.msra.mxu0 0
        %2098 = vmatprep.subr.bf16.mxu0 0
        %2099 = vmatpush1.bf16.msra.mxu0 0
        %2100 = vmatprep.subr.bf16.mxu0 0
        %2101 = vmatpush1.bf16.msra.mxu0 0
        %2102 = vmatprep.subr.bf16.mxu0 0
        %2103 = vmatpush1.bf16.msra.mxu0 0
        %2104 = vmatprep.subr.bf16.mxu0 0
        %2105 = vmatpush1.bf16.msra.mxu0 0
        %2106 = vmatprep.subr.bf16.mxu0 0
        %2107 = vmatpush1.bf16.msra.mxu0 0
        %2108 = vmatprep.subr.bf16.mxu0 0
        %2109 = vmatpush1.bf16.msra.mxu0 0
        %2110 = vmatprep.subr.bf16.mxu0 0
        %2111 = vmatpush1.bf16.msra.mxu0 0
        %2112 = vmatprep.mubr.bf16.mxu0 0
        %2113 = vmatmul.mubr.bf16.gmra.mrb[0].mxu0 %v509
        %v2114 = vpop.f32.mrb[0].mxu0
        %v2115 = vadd.f32 0.0, %v2114
        %v2116 = vpop.f32.mrb[0].mxu0
        %v2117 = vpop.f32.mrb[0].mxu0
        %v2118 = vadd.f32 0.0, %v2117
        %v2119 = vpop.f32.mrb[0].mxu0
        %2120 = vmatprep.mubr.bf16.mxu0 0
        %2121 = vmatmul.mubr.bf16.gmra.mrb[0].mxu0 %v512
        %v2122 = vpop.f32.mrb[0].mxu0
        %v2123 = vadd.f32 0.0, %v2122
        %v2124 = vpop.f32.mrb[0].mxu0
        %v2125 = vpop.f32.mrb[0].mxu0
        %v2126 = vadd.f32 0.0, %v2125
        %v2127 = vpop.f32.mrb[0].mxu0
        %2128 = vmatprep.mubr.bf16.mxu0 0
        %2129 = vmatmul.mubr.bf16.gmra.mrb[0].mxu0 %v515
        %v2130 = vpop.f32.mrb[0].mxu0
        %v2131 = vadd.f32 0.0, %v2130
        %v2132 = vpop.f32.mrb[0].mxu0
        %v2133 = vpop.f32.mrb[0].mxu0
        %v2134 = vadd.f32 0.0, %v2133
        %v2135 = vpop.f32.mrb[0].mxu0
        %2136 = vmatprep.mubr.bf16.mxu0 0
        %2137 = vmatmul.mubr.bf16.gmra.mrb[0].mxu0 %v518
        %v2138 = vpop.f32.mrb[0].mxu0
        %v2139 = vadd.f32 0.0, %v2138
        %v2140 = vpop.f32.mrb[0].mxu0
        %v2141 = vpop.f32.mrb[0].mxu0
        %v2142 = vadd.f32 0.0, %v2141
        %v2143 = vpop.f32.mrb[0].mxu0
        %2144 = vmatprep.mubr.bf16.mxu0 0
        %2145 = vmatmul.mubr.bf16.gmra.mrb[0].mxu0 %v521
        %v2146 = vpop.f32.mrb[0].mxu0
        %v2147 = vadd.f32 0.0, %v2146
        %v2148 = vpop.f32.mrb[0].mxu0
        %v2149 = vpop.f32.mrb[0].mxu0
        %v2150 = vadd.f32 0.0, %v2149
        %v2151 = vpop.f32.mrb[0].mxu0
        %2152 = vmatprep.mubr.bf16.mxu0 0
        %2153 = vmatmul.mubr.bf16.gmra.mrb[0].mxu0 %v524
        %v2154 = vpop.f32.mrb[0].mxu0
        %v2155 = vadd.f32 0.0, %v2154
        %v2156 = vpop.f32.mrb[0].mxu0
        %v2157 = vpop.f32.mrb[0].mxu0
        %v2158 = vadd.f32 0.0, %v2157
        %v2159 = vpop.f32.mrb[0].mxu0
        %2160 = vmatprep.mubr.bf16.mxu0 0
        %2161 = vmatmul.mubr.bf16.gmra.mrb[0].mxu0 %v527
        %v2162 = vpop.f32.mrb[0].mxu0
        %v2163 = vadd.f32 0.0, %v2162
        %v2164 = vpop.f32.mrb[0].mxu0
        %v2165 = vpop.f32.mrb[0].mxu0
        %v2166 = vadd.f32 0.0, %v2165
        %v2167 = vpop.f32.mrb[0].mxu0
        %2168 = vmatprep.mubr.bf16.mxu0 0
        %2169 = vmatmul.mubr.bf16.gmra.mrb[0].mxu0 %v530
        %v2170 = vpop.f32.mrb[0].mxu0
        %v2171 = vadd.f32 0.0, %v2170
        %v2172 = vpop.f32.mrb[0].mxu0
        %v2173 = vpop.f32.mrb[0].mxu0
        %v2174 = vadd.f32 0.0, %v2173
        %v2175 = vpop.f32.mrb[0].mxu0
        %2176 = vmatprep.mubr.bf16.mxu0 0
        %2177 = vmatmul.mubr.bf16.gmra.mrb[0].mxu0 %v533
        %v2178 = vpop.f32.mrb[0].mxu0
        %v2179 = vadd.f32 0.0, %v2178
        %v2180 = vpop.f32.mrb[0].mxu0
        %v2181 = vpop.f32.mrb[0].mxu0
        %v2182 = vadd.f32 0.0, %v2181
        %v2183 = vpop.f32.mrb[0].mxu0
        %2184 = vmatprep.mubr.bf16.mxu0 0
        %2185 = vmatmul.mubr.bf16.gmra.mrb[0].mxu0 %v536
        %v2186 = vpop.f32.mrb[0].mxu0
        %v2187 = vadd.f32 0.0, %v2186
        %v2188 = vpop.f32.mrb[0].mxu0
        %v2189 = vpop.f32.mrb[0].mxu0
        %v2190 = vadd.f32 0.0, %v2189
        %v2191 = vpop.f32.mrb[0].mxu0
        %2192 = vmatprep.mubr.bf16.mxu0 0
        %2193 = vmatmul.mubr.bf16.gmra.mrb[0].mxu0 %v539
        %v2194 = vpop.f32.mrb[0].mxu0
        %v2195 = vadd.f32 0.0, %v2194
        %v2196 = vpop.f32.mrb[0].mxu0
        %v2197 = vpop.f32.mrb[0].mxu0
        %v2198 = vadd.f32 0.0, %v2197
        %v2199 = vpop.f32.mrb[0].mxu0
        %2200 = vmatprep.mubr.bf16.mxu0 0
        %2201 = vmatmul.mubr.bf16.gmra.mrb[0].mxu0 %v542
        %v2202 = vpop.f32.mrb[0].mxu0
        %v2203 = vadd.f32 0.0, %v2202
        %v2204 = vpop.f32.mrb[0].mxu0
        %v2205 = vpop.f32.mrb[0].mxu0
        %v2206 = vadd.f32 0.0, %v2205
        %v2207 = vpop.f32.mrb[0].mxu0
        %2208 = vmatprep.mubr.bf16.mxu0 0
        %2209 = vmatmul.mubr.bf16.gmra.mrb[0].mxu0 %v545
        %v2210 = vpop.f32.mrb[0].mxu0
        %v2211 = vadd.f32 0.0, %v2210
        %v2212 = vpop.f32.mrb[0].mxu0
        %v2213 = vpop.f32.mrb[0].mxu0
        %v2214 = vadd.f32 0.0, %v2213
        %v2215 = vpop.f32.mrb[0].mxu0
        %2216 = vmatprep.mubr.bf16.mxu0 0
        %2217 = vmatmul.mubr.bf16.gmra.mrb[0].mxu0 %v548
        %v2218 = vpop.f32.mrb[0].mxu0
        %v2219 = vadd.f32 0.0, %v2218
        %v2220 = vpop.f32.mrb[0].mxu0
        %v2221 = vpop.f32.mrb[0].mxu0
        %v2222 = vadd.f32 0.0, %v2221
        %v2223 = vpop.f32.mrb[0].mxu0
        %2224 = vmatprep.mubr.bf16.mxu0 0
        %2225 = vmatmul.mubr.bf16.gmra.mrb[0].mxu0 %v1456
        %v2226 = vpop.f32.mrb[0].mxu0
        %v2227 = vadd.f32 0.0, %v2226
        %v2228 = vpop.f32.mrb[0].mxu0
        %v2229 = vpop.f32.mrb[0].mxu0
        %v2230 = vadd.f32 0.0, %v2229
        %v2231 = vpop.f32.mrb[0].mxu0
        %2232 = vmatprep.mubr.bf16.mxu0 0
        %2233 = vmatmul.mubr.bf16.gmra.mrb[0].mxu0 %v2075
        %v2234 = vpop.f32.mrb[0].mxu0
        %v2235 = vadd.f32 0.0, %v2234
        %v2236 = vpop.f32.mrb[0].mxu0
        %v2237 = vpop.f32.mrb[0].mxu0
        %v2238 = vadd.f32 0.0, %v2237
        %v2239 = vpop.f32.mrb[0].mxu0
        %2240 = vdwg.mxu0
        %v2241 = vadd.f32 %v2029, %v2115
        %v2242 = vadd.f32 %v2030, %v2118
        %v2243 = vadd.f32 %v2031, %v2123
        %v2244 = vadd.f32 %v2032, %v2126
        %v2245 = vadd.f32 %v2033, %v2131
        %v2246 = vadd.f32 %v2034, %v2134
        %v2247 = vadd.f32 %v2035, %v2139
        %v2248 = vadd.f32 %v2036, %v2142
        %v2249 = vadd.f32 %v2037, %v2147
        %v2250 = vadd.f32 %v2038, %v2150
        %v2251 = vadd.f32 %v2039, %v2155
        %v2252 = vadd.f32 %v2040, %v2158
        %v2253 = vadd.f32 %v2041, %v2163
        %v2254 = vadd.f32 %v2042, %v2166
        %v2255 = vadd.f32 %v2043, %v2171
        %v2256 = vadd.f32 %v2044, %v2174
        %v2257 = vadd.f32 %v2045, %v2179
        %v2258 = vadd.f32 %v2046, %v2182
        %v2259 = vadd.f32 %v2047, %v2187
        %v2260 = vadd.f32 %v2048, %v2190
        %v2261 = vadd.f32 %v2049, %v2195
        %v2262 = vadd.f32 %v2050, %v2198
        %v2263 = vadd.f32 %v2051, %v2203
        %v2264 = vadd.f32 %v2052, %v2206
        %v2265 = vadd.f32 %v2053, %v2211
        %v2266 = vadd.f32 %v2054, %v2214
        %v2267 = vadd.f32 %v2055, %v2219
        %v2268 = vadd.f32 %v2056, %v2222
        %v2269 = vadd.f32 %v2057, %v2227
        %v2270 = vadd.f32 %v2058, %v2230
        %v2271 = vadd.f32 %v2059, %v2235
        %v2272 = vadd.f32 %v2060, %v2238
        %v2275 = vrot.slane %v303, 1
        %v2276 = vrot.slane %v304, 1
        %v2277 = vsel %vm946, %v2275, %v2276
        %s2278 = scalar_lea.vmem %s1, 16
        %v2279 = vld [vmem:[%s2278] sm:$0x3]
        %v2281 = vsel %vm501, %v2277, 0
        %v2284 = vand.u32 %v2279, %v553
        %2286 = vmatprep.subr.bf16.mxu0 0
        %2287 = vmatpush1.bf16.msra.mxu0 %v2284
        %2288 = vmatprep.subr.bf16.mxu0 0
        %2289 = vmatpush1.bf16.msra.mxu0 0
        %2290 = vmatprep.subr.bf16.mxu0 0
        %2291 = vmatpush1.bf16.msra.mxu0 0
        %2292 = vmatprep.subr.bf16.mxu0 0
        %2293 = vmatpush1.bf16.msra.mxu0 0
        %2294 = vmatprep.subr.bf16.mxu0 0
        %2295 = vmatpush1.bf16.msra.mxu0 0
        %2296 = vmatprep.subr.bf16.mxu0 0
        %2297 = vmatpush1.bf16.msra.mxu0 0
        %2298 = vmatprep.subr.bf16.mxu0 0
        %2299 = vmatpush1.bf16.msra.mxu0 0
        %2300 = vmatprep.subr.bf16.mxu0 0
        %2301 = vmatpush1.bf16.msra.mxu0 0
        %2302 = vmatprep.subr.bf16.mxu0 0
        %2303 = vmatpush1.bf16.msra.mxu0 0
        %2304 = vmatprep.subr.bf16.mxu0 0
        %2305 = vmatpush1.bf16.msra.mxu0 0
        %2306 = vmatprep.subr.bf16.mxu0 0
        %2307 = vmatpush1.bf16.msra.mxu0 0
        %2308 = vmatprep.subr.bf16.mxu0 0
        %2309 = vmatpush1.bf16.msra.mxu0 0
        %2310 = vmatprep.subr.bf16.mxu0 0
        %2311 = vmatpush1.bf16.msra.mxu0 0
        %2312 = vmatprep.subr.bf16.mxu0 0
        %2313 = vmatpush1.bf16.msra.mxu0 0
        %2314 = vmatprep.subr.bf16.mxu0 0
        %2315 = vmatpush1.bf16.msra.mxu0 0
        %2316 = vmatprep.subr.bf16.mxu0 0
        %2317 = vmatpush1.bf16.msra.mxu0 0
        %2318 = vmatprep.mubr.bf16.mxu0 0
        %2319 = vmatmul.mubr.bf16.gmra.mrb[0].mxu0 %v1004
        %v2320 = vpop.f32.mrb[0].mxu0
        %v2321 = vadd.f32 0.0, %v2320
        %v2322 = vpop.f32.mrb[0].mxu0
        %v2323 = vpop.f32.mrb[0].mxu0
        %v2324 = vadd.f32 0.0, %v2323
        %v2325 = vpop.f32.mrb[0].mxu0
        %2326 = vmatprep.mubr.bf16.mxu0 0
        %2327 = vmatmul.mubr.bf16.gmra.mrb[0].mxu0 %v1007
        %v2328 = vpop.f32.mrb[0].mxu0
        %v2329 = vadd.f32 0.0, %v2328
        %v2330 = vpop.f32.mrb[0].mxu0
        %v2331 = vpop.f32.mrb[0].mxu0
        %v2332 = vadd.f32 0.0, %v2331
        %v2333 = vpop.f32.mrb[0].mxu0
        %2334 = vmatprep.mubr.bf16.mxu0 0
        %2335 = vmatmul.mubr.bf16.gmra.mrb[0].mxu0 %v1010
        %v2336 = vpop.f32.mrb[0].mxu0
        %v2337 = vadd.f32 0.0, %v2336
        %v2338 = vpop.f32.mrb[0].mxu0
        %v2339 = vpop.f32.mrb[0].mxu0
        %v2340 = vadd.f32 0.0, %v2339
        %v2341 = vpop.f32.mrb[0].mxu0
        %2342 = vmatprep.mubr.bf16.mxu0 0
        %2343 = vmatmul.mubr.bf16.gmra.mrb[0].mxu0 %v1013
        %v2344 = vpop.f32.mrb[0].mxu0
        %v2345 = vadd.f32 0.0, %v2344
        %v2346 = vpop.f32.mrb[0].mxu0
        %v2347 = vpop.f32.mrb[0].mxu0
        %v2348 = vadd.f32 0.0, %v2347
        %v2349 = vpop.f32.mrb[0].mxu0
        %2350 = vmatprep.mubr.bf16.mxu0 0
        %2351 = vmatmul.mubr.bf16.gmra.mrb[0].mxu0 %v1016
        %v2352 = vpop.f32.mrb[0].mxu0
        %v2353 = vadd.f32 0.0, %v2352
        %v2354 = vpop.f32.mrb[0].mxu0
        %v2355 = vpop.f32.mrb[0].mxu0
        %v2356 = vadd.f32 0.0, %v2355
        %v2357 = vpop.f32.mrb[0].mxu0
        %2358 = vmatprep.mubr.bf16.mxu0 0
        %2359 = vmatmul.mubr.bf16.gmra.mrb[0].mxu0 %v1019
        %v2360 = vpop.f32.mrb[0].mxu0
        %v2361 = vadd.f32 0.0, %v2360
        %v2362 = vpop.f32.mrb[0].mxu0
        %v2363 = vpop.f32.mrb[0].mxu0
        %v2364 = vadd.f32 0.0, %v2363
        %v2365 = vpop.f32.mrb[0].mxu0
        %2366 = vmatprep.mubr.bf16.mxu0 0
        %2367 = vmatmul.mubr.bf16.gmra.mrb[0].mxu0 %v1022
        %v2368 = vpop.f32.mrb[0].mxu0
        %v2369 = vadd.f32 0.0, %v2368
        %v2370 = vpop.f32.mrb[0].mxu0
        %v2371 = vpop.f32.mrb[0].mxu0
        %v2372 = vadd.f32 0.0, %v2371
        %v2373 = vpop.f32.mrb[0].mxu0
        %2374 = vmatprep.mubr.bf16.mxu0 0
        %2375 = vmatmul.mubr.bf16.gmra.mrb[0].mxu0 %v1025
        %v2376 = vpop.f32.mrb[0].mxu0
        %v2377 = vadd.f32 0.0, %v2376
        %v2378 = vpop.f32.mrb[0].mxu0
        %v2379 = vpop.f32.mrb[0].mxu0
        %v2380 = vadd.f32 0.0, %v2379
        %v2381 = vpop.f32.mrb[0].mxu0
        %2382 = vmatprep.mubr.bf16.mxu0 0
        %2383 = vmatmul.mubr.bf16.gmra.mrb[0].mxu0 %v1028
        %v2384 = vpop.f32.mrb[0].mxu0
        %v2385 = vadd.f32 0.0, %v2384
        %v2386 = vpop.f32.mrb[0].mxu0
        %v2387 = vpop.f32.mrb[0].mxu0
        %v2388 = vadd.f32 0.0, %v2387
        %v2389 = vpop.f32.mrb[0].mxu0
        %2390 = vmatprep.mubr.bf16.mxu0 0
        %2391 = vmatmul.mubr.bf16.gmra.mrb[0].mxu0 %v1031
        %v2392 = vpop.f32.mrb[0].mxu0
        %v2393 = vadd.f32 0.0, %v2392
        %v2394 = vpop.f32.mrb[0].mxu0
        %v2395 = vpop.f32.mrb[0].mxu0
        %v2396 = vadd.f32 0.0, %v2395
        %v2397 = vpop.f32.mrb[0].mxu0
        %2398 = vmatprep.mubr.bf16.mxu0 0
        %2399 = vmatmul.mubr.bf16.gmra.mrb[0].mxu0 %v1034
        %v2400 = vpop.f32.mrb[0].mxu0
        %v2401 = vadd.f32 0.0, %v2400
        %v2402 = vpop.f32.mrb[0].mxu0
        %v2403 = vpop.f32.mrb[0].mxu0
        %v2404 = vadd.f32 0.0, %v2403
        %v2405 = vpop.f32.mrb[0].mxu0
        %2406 = vmatprep.mubr.bf16.mxu0 0
        %2407 = vmatmul.mubr.bf16.gmra.mrb[0].mxu0 %v1037
        %v2408 = vpop.f32.mrb[0].mxu0
        %v2409 = vadd.f32 0.0, %v2408
        %v2410 = vpop.f32.mrb[0].mxu0
        %v2411 = vpop.f32.mrb[0].mxu0
        %v2412 = vadd.f32 0.0, %v2411
        %v2413 = vpop.f32.mrb[0].mxu0
        %2414 = vmatprep.mubr.bf16.mxu0 0
        %2415 = vmatmul.mubr.bf16.gmra.mrb[0].mxu0 %v1040
        %v2416 = vpop.f32.mrb[0].mxu0
        %v2417 = vadd.f32 0.0, %v2416
        %v2418 = vpop.f32.mrb[0].mxu0
        %v2419 = vpop.f32.mrb[0].mxu0
        %v2420 = vadd.f32 0.0, %v2419
        %v2421 = vpop.f32.mrb[0].mxu0
        %2422 = vmatprep.mubr.bf16.mxu0 0
        %2423 = vmatmul.mubr.bf16.gmra.mrb[0].mxu0 %v1043
        %v2424 = vpop.f32.mrb[0].mxu0
        %v2425 = vadd.f32 0.0, %v2424
        %v2426 = vpop.f32.mrb[0].mxu0
        %v2427 = vpop.f32.mrb[0].mxu0
        %v2428 = vadd.f32 0.0, %v2427
        %v2429 = vpop.f32.mrb[0].mxu0
        %2430 = vmatprep.mubr.bf16.mxu0 0
        %2431 = vmatmul.mubr.bf16.gmra.mrb[0].mxu0 %v1662
        %v2432 = vpop.f32.mrb[0].mxu0
        %v2433 = vadd.f32 0.0, %v2432
        %v2434 = vpop.f32.mrb[0].mxu0
        %v2435 = vpop.f32.mrb[0].mxu0
        %v2436 = vadd.f32 0.0, %v2435
        %v2437 = vpop.f32.mrb[0].mxu0
        %2438 = vmatprep.mubr.bf16.mxu0 0
        %2439 = vmatmul.mubr.bf16.gmra.mrb[0].mxu0 %v2281
        %v2440 = vpop.f32.mrb[0].mxu0
        %v2441 = vadd.f32 0.0, %v2440
        %v2442 = vpop.f32.mrb[0].mxu0
        %v2443 = vpop.f32.mrb[0].mxu0
        %v2444 = vadd.f32 0.0, %v2443
        %v2445 = vpop.f32.mrb[0].mxu0
        %2446 = vdwg.mxu0
        %v2447 = vadd.f32 %v2241, %v2321
        %v2448 = vadd.f32 %v2242, %v2324
        %v2449 = vadd.f32 %v2243, %v2329
        %v2450 = vadd.f32 %v2244, %v2332
        %v2451 = vadd.f32 %v2245, %v2337
        %v2452 = vadd.f32 %v2246, %v2340
        %v2453 = vadd.f32 %v2247, %v2345
        %v2454 = vadd.f32 %v2248, %v2348
        %v2455 = vadd.f32 %v2249, %v2353
        %v2456 = vadd.f32 %v2250, %v2356
        %v2457 = vadd.f32 %v2251, %v2361
        %v2458 = vadd.f32 %v2252, %v2364
        %v2459 = vadd.f32 %v2253, %v2369
        %v2460 = vadd.f32 %v2254, %v2372
        %v2461 = vadd.f32 %v2255, %v2377
        %v2462 = vadd.f32 %v2256, %v2380
        %v2463 = vadd.f32 %v2257, %v2385
        %v2464 = vadd.f32 %v2258, %v2388
        %v2465 = vadd.f32 %v2259, %v2393
        %v2466 = vadd.f32 %v2260, %v2396
        %v2467 = vadd.f32 %v2261, %v2401
        %v2468 = vadd.f32 %v2262, %v2404
        %v2469 = vadd.f32 %v2263, %v2409
        %v2470 = vadd.f32 %v2264, %v2412
        %v2471 = vadd.f32 %v2265, %v2417
        %v2472 = vadd.f32 %v2266, %v2420
        %v2473 = vadd.f32 %v2267, %v2425
        %v2474 = vadd.f32 %v2268, %v2428
        %v2475 = vadd.f32 %v2269, %v2433
        %v2476 = vadd.f32 %v2270, %v2436
        %v2477 = vadd.f32 %v2271, %v2441
        %v2478 = vadd.f32 %v2272, %v2444
        %v2479 = vld [vmem:[%s2] sm:$0x1]
        %v2481 = vlaneseq
        %v2482 = vshrl.u32 %v2481, 7
        %v2483 = vsub.s32 0, %v2482
        %v2484 = vrot.slane %v2479, %v2483
        %v2486 = vadd.f32 %v2447, %v2484
        %v2487 = vadd.f32 %v2448, %v2484
        %v2488 = vadd.f32 %v2449, %v2484
        %v2489 = vadd.f32 %v2450, %v2484
        %v2490 = vadd.f32 %v2451, %v2484
        %v2491 = vadd.f32 %v2452, %v2484
        %v2492 = vadd.f32 %v2453, %v2484
        %v2493 = vadd.f32 %v2454, %v2484
        %v2494 = vadd.f32 %v2455, %v2484
        %v2495 = vadd.f32 %v2456, %v2484
        %v2496 = vadd.f32 %v2457, %v2484
        %v2497 = vadd.f32 %v2458, %v2484
        %v2498 = vadd.f32 %v2459, %v2484
        %v2499 = vadd.f32 %v2460, %v2484
        %v2500 = vadd.f32 %v2461, %v2484
        %v2501 = vadd.f32 %v2462, %v2484
        %v2502 = vadd.f32 %v2463, %v2484
        %v2503 = vadd.f32 %v2464, %v2484
        %v2504 = vadd.f32 %v2465, %v2484
        %v2505 = vadd.f32 %v2466, %v2484
        %v2506 = vadd.f32 %v2467, %v2484
        %v2507 = vadd.f32 %v2468, %v2484
        %v2508 = vadd.f32 %v2469, %v2484
        %v2509 = vadd.f32 %v2470, %v2484
        %v2510 = vadd.f32 %v2471, %v2484
        %v2511 = vadd.f32 %v2472, %v2484
        %v2512 = vadd.f32 %v2473, %v2484
        %v2513 = vadd.f32 %v2474, %v2484
        %v2514 = vadd.f32 %v2475, %v2484
        %v2515 = vadd.f32 %v2476, %v2484
        %v2516 = vadd.f32 %v2477, %v2484
        %v2517 = vadd.f32 %v2478, %v2484
        %vm2518 = vcmp.ge.f32.partialorder %v2486, 0.0
        %vm2519 = vcmp.ge.f32.partialorder %v2487, 0.0
        %vm2520 = vcmp.ge.f32.partialorder %v2488, 0.0
        %vm2521 = vcmp.ge.f32.partialorder %v2489, 0.0
        %vm2522 = vcmp.ge.f32.partialorder %v2490, 0.0
        %vm2523 = vcmp.ge.f32.partialorder %v2491, 0.0
        %vm2524 = vcmp.ge.f32.partialorder %v2492, 0.0
        %vm2525 = vcmp.ge.f32.partialorder %v2493, 0.0
        %vm2526 = vcmp.ge.f32.partialorder %v2494, 0.0
        %vm2527 = vcmp.ge.f32.partialorder %v2495, 0.0
        %vm2528 = vcmp.ge.f32.partialorder %v2496, 0.0
        %vm2529 = vcmp.ge.f32.partialorder %v2497, 0.0
        %vm2530 = vcmp.ge.f32.partialorder %v2498, 0.0
        %vm2531 = vcmp.ge.f32.partialorder %v2499, 0.0
        %vm2532 = vcmp.ge.f32.partialorder %v2500, 0.0
        %vm2533 = vcmp.ge.f32.partialorder %v2501, 0.0
        %vm2534 = vcmp.ge.f32.partialorder %v2502, 0.0
        %vm2535 = vcmp.ge.f32.partialorder %v2503, 0.0
        %vm2536 = vcmp.ge.f32.partialorder %v2504, 0.0
        %vm2537 = vcmp.ge.f32.partialorder %v2505, 0.0
        %vm2538 = vcmp.ge.f32.partialorder %v2506, 0.0
        %vm2539 = vcmp.ge.f32.partialorder %v2507, 0.0
        %vm2540 = vcmp.ge.f32.partialorder %v2508, 0.0
        %vm2541 = vcmp.ge.f32.partialorder %v2509, 0.0
        %vm2542 = vcmp.ge.f32.partialorder %v2510, 0.0
        %vm2543 = vcmp.ge.f32.partialorder %v2511, 0.0
        %vm2544 = vcmp.ge.f32.partialorder %v2512, 0.0
        %vm2545 = vcmp.ge.f32.partialorder %v2513, 0.0
        %vm2546 = vcmp.ge.f32.partialorder %v2514, 0.0
        %vm2547 = vcmp.ge.f32.partialorder %v2515, 0.0
        %vm2548 = vcmp.ge.f32.partialorder %v2516, 0.0
        %vm2549 = vcmp.ge.f32.partialorder %v2517, 0.0
        %v2550 = vld [vmem:[%s3] sm:$0x1]
        %v2552 = vlaneseq
        %v2553 = vshrl.u32 %v2552, 7
        %v2554 = vsub.s32 0, %v2553
        %v2555 = vrot.slane %v2550, %v2554
        %v2557 = vmul.f32 %v2486, %v2555
        %v2558 = vmul.f32 %v2487, %v2555
        %v2559 = vmul.f32 %v2488, %v2555
        %v2560 = vmul.f32 %v2489, %v2555
        %v2561 = vmul.f32 %v2490, %v2555
        %v2562 = vmul.f32 %v2491, %v2555
        %v2563 = vmul.f32 %v2492, %v2555
        %v2564 = vmul.f32 %v2493, %v2555
        %v2565 = vmul.f32 %v2494, %v2555
        %v2566 = vmul.f32 %v2495, %v2555
        %v2567 = vmul.f32 %v2496, %v2555
        %v2568 = vmul.f32 %v2497, %v2555
        %v2569 = vmul.f32 %v2498, %v2555
        %v2570 = vmul.f32 %v2499, %v2555
        %v2571 = vmul.f32 %v2500, %v2555
        %v2572 = vmul.f32 %v2501, %v2555
        %v2573 = vmul.f32 %v2502, %v2555
        %v2574 = vmul.f32 %v2503, %v2555
        %v2575 = vmul.f32 %v2504, %v2555
        %v2576 = vmul.f32 %v2505, %v2555
        %v2577 = vmul.f32 %v2506, %v2555
        %v2578 = vmul.f32 %v2507, %v2555
        %v2579 = vmul.f32 %v2508, %v2555
        %v2580 = vmul.f32 %v2509, %v2555
        %v2581 = vmul.f32 %v2510, %v2555
        %v2582 = vmul.f32 %v2511, %v2555
        %v2583 = vmul.f32 %v2512, %v2555
        %v2584 = vmul.f32 %v2513, %v2555
        %v2585 = vmul.f32 %v2514, %v2555
        %v2586 = vmul.f32 %v2515, %v2555
        %v2587 = vmul.f32 %v2516, %v2555
        %v2588 = vmul.f32 %v2517, %v2555
        %v2589 = vsel %vm2518, %v2486, %v2557
        %v2590 = vsel %vm2519, %v2487, %v2558
        %v2591 = vsel %vm2520, %v2488, %v2559
        %v2592 = vsel %vm2521, %v2489, %v2560
        %v2593 = vsel %vm2522, %v2490, %v2561
        %v2594 = vsel %vm2523, %v2491, %v2562
        %v2595 = vsel %vm2524, %v2492, %v2563
        %v2596 = vsel %vm2525, %v2493, %v2564
        %v2597 = vsel %vm2526, %v2494, %v2565
        %v2598 = vsel %vm2527, %v2495, %v2566
        %v2599 = vsel %vm2528, %v2496, %v2567
        %v2600 = vsel %vm2529, %v2497, %v2568
        %v2601 = vsel %vm2530, %v2498, %v2569
        %v2602 = vsel %vm2531, %v2499, %v2570
        %v2603 = vsel %vm2532, %v2500, %v2571
        %v2604 = vsel %vm2533, %v2501, %v2572
        %v2605 = vsel %vm2534, %v2502, %v2573
        %v2606 = vsel %vm2535, %v2503, %v2574
        %v2607 = vsel %vm2536, %v2504, %v2575
        %v2608 = vsel %vm2537, %v2505, %v2576
        %v2609 = vsel %vm2538, %v2506, %v2577
        %v2610 = vsel %vm2539, %v2507, %v2578
        %v2611 = vsel %vm2540, %v2508, %v2579
        %v2612 = vsel %vm2541, %v2509, %v2580
        %v2613 = vsel %vm2542, %v2510, %v2581
        %v2614 = vsel %vm2543, %v2511, %v2582
        %v2615 = vsel %vm2544, %v2512, %v2583
        %v2616 = vsel %vm2545, %v2513, %v2584
        %v2617 = vsel %vm2546, %v2514, %v2585
        %v2618 = vsel %vm2547, %v2515, %v2586
        %v2619 = vsel %vm2548, %v2516, %v2587
        %v2620 = vsel %vm2549, %v2517, %v2588
        %v2621 = vpack.c.bf16 %v2590, %v2589
        %v2622 = vpack.c.bf16 %v2592, %v2591
        %v2623 = vpack.c.bf16 %v2594, %v2593
        %v2624 = vpack.c.bf16 %v2596, %v2595
        %v2625 = vpack.c.bf16 %v2598, %v2597
        %v2626 = vpack.c.bf16 %v2600, %v2599
        %v2627 = vpack.c.bf16 %v2602, %v2601
        %v2628 = vpack.c.bf16 %v2604, %v2603
        %v2629 = vpack.c.bf16 %v2606, %v2605
        %v2630 = vpack.c.bf16 %v2608, %v2607
        %v2631 = vpack.c.bf16 %v2610, %v2609
        %v2632 = vpack.c.bf16 %v2612, %v2611
        %v2633 = vpack.c.bf16 %v2614, %v2613
        %v2634 = vpack.c.bf16 %v2616, %v2615
        %v2635 = vpack.c.bf16 %v2618, %v2617
        %v2636 = vpack.c.bf16 %v2620, %v2619
        %v2653 = vunpack.c.l.b16 %v2621
        %v2654 = vunpack.c.h.b16 %v2621
        %v2655 = vunpack.c.l.b16 %v2622
        %v2656 = vunpack.c.h.b16 %v2622
        %v2657 = vunpack.c.l.b16 %v2623
        %v2658 = vunpack.c.h.b16 %v2623
        %v2659 = vunpack.c.l.b16 %v2624
        %v2660 = vunpack.c.h.b16 %v2624
        %v2661 = vunpack.c.l.b16 %v2625
        %v2662 = vunpack.c.h.b16 %v2625
        %v2663 = vunpack.c.l.b16 %v2626
        %v2664 = vunpack.c.h.b16 %v2626
        %v2665 = vunpack.c.l.b16 %v2627
        %v2666 = vunpack.c.h.b16 %v2627
        %v2667 = vunpack.c.l.b16 %v2628
        %v2668 = vunpack.c.h.b16 %v2628
        %v2669 = vunpack.c.l.b16 %v2629
        %v2670 = vunpack.c.h.b16 %v2629
        %v2671 = vunpack.c.l.b16 %v2630
        %v2672 = vunpack.c.h.b16 %v2630
        %v2673 = vunpack.c.l.b16 %v2631
        %v2674 = vunpack.c.h.b16 %v2631
        %v2675 = vunpack.c.l.b16 %v2632
        %v2676 = vunpack.c.h.b16 %v2632
        %v2677 = vunpack.c.l.b16 %v2633
        %v2678 = vunpack.c.h.b16 %v2633
        %v2679 = vunpack.c.l.b16 %v2634
        %v2680 = vunpack.c.h.b16 %v2634
        %v2681 = vunpack.c.l.b16 %v2635
        %v2682 = vunpack.c.h.b16 %v2635
        %v2683 = vunpack.c.l.b16 %v2636
        %v2684 = vunpack.c.h.b16 %v2636
        %v2685 = vpack.c.b16 %v2653, %v2653
        %v2686 = vpack.c.b16 %v2654, %v2654
        %v2687 = vpack.c.b16 %v2655, %v2655
        %v2688 = vpack.c.b16 %v2656, %v2656
        %v2689 = vpack.c.b16 %v2657, %v2657
        %v2690 = vpack.c.b16 %v2658, %v2658
        %v2691 = vpack.c.b16 %v2659, %v2659
        %v2692 = vpack.c.b16 %v2660, %v2660
        %v2693 = vpack.c.b16 %v2661, %v2661
        %v2694 = vpack.c.b16 %v2662, %v2662
        %v2695 = vpack.c.b16 %v2663, %v2663
        %v2696 = vpack.c.b16 %v2664, %v2664
        %v2697 = vpack.c.b16 %v2665, %v2665
        %v2698 = vpack.c.b16 %v2666, %v2666
        %v2699 = vpack.c.b16 %v2667, %v2667
        %v2700 = vpack.c.b16 %v2668, %v2668
        %v2701 = vpack.c.b16 %v2669, %v2669
        %v2702 = vpack.c.b16 %v2670, %v2670
        %v2703 = vpack.c.b16 %v2671, %v2671
        %v2704 = vpack.c.b16 %v2672, %v2672
        %v2705 = vpack.c.b16 %v2673, %v2673
        %v2706 = vpack.c.b16 %v2674, %v2674
        %v2707 = vpack.c.b16 %v2675, %v2675
        %v2708 = vpack.c.b16 %v2676, %v2676
        %v2709 = vpack.c.b16 %v2677, %v2677
        %v2710 = vpack.c.b16 %v2678, %v2678
        %v2711 = vpack.c.b16 %v2679, %v2679
        %v2712 = vpack.c.b16 %v2680, %v2680
        %v2713 = vpack.c.b16 %v2681, %v2681
        %v2714 = vpack.c.b16 %v2682, %v2682
        %v2715 = vpack.c.b16 %v2683, %v2683
        %v2716 = vpack.c.b16 %v2684, %v2684
        %vm2749 = vcmask 519168
        %2750 = vst.msk [vmem:[%s204] sm:$0xf] %vm2749, %v2685
        %2751 = vst.msk [vmem:[%s204 + $0x4] sm:$0xf] %vm2749, %v2686
        %2752 = vst.msk [vmem:[%s204 + $0x8] sm:$0xf] %vm2749, %v2687
        %2753 = vst.msk [vmem:[%s204 + $0xc] sm:$0xf] %vm2749, %v2688
        %2754 = vst.msk [vmem:[%s204 + $0x10] sm:$0xf] %vm2749, %v2689
        %2755 = vst.msk [vmem:[%s204 + $0x14] sm:$0xf] %vm2749, %v2690
        %2756 = vst.msk [vmem:[%s204 + $0x18] sm:$0xf] %vm2749, %v2691
        %2757 = vst.msk [vmem:[%s204 + $0x1c] sm:$0xf] %vm2749, %v2692
        %2758 = vst.msk [vmem:[%s204 + $0x20] sm:$0xf] %vm2749, %v2693
        %2759 = vst.msk [vmem:[%s204 + $0x24] sm:$0xf] %vm2749, %v2694
        %2760 = vst.msk [vmem:[%s204 + $0x28] sm:$0xf] %vm2749, %v2695
        %2761 = vst.msk [vmem:[%s204 + $0x2c] sm:$0xf] %vm2749, %v2696
        %2762 = vst.msk [vmem:[%s204 + $0x30] sm:$0xf] %vm2749, %v2697
        %2763 = vst.msk [vmem:[%s204 + $0x34] sm:$0xf] %vm2749, %v2698
        %2764 = vst.msk [vmem:[%s204 + $0x38] sm:$0xf] %vm2749, %v2699
        %2765 = vst.msk [vmem:[%s204 + $0x3c] sm:$0xf] %vm2749, %v2700
        %2766 = vst.msk [vmem:[%s204 + $0x40] sm:$0xf] %vm2749, %v2701
        %2767 = vst.msk [vmem:[%s204 + $0x44] sm:$0xf] %vm2749, %v2702
        %2768 = vst.msk [vmem:[%s204 + $0x48] sm:$0xf] %vm2749, %v2703
        %2769 = vst.msk [vmem:[%s204 + $0x4c] sm:$0xf] %vm2749, %v2704
        %2770 = vst.msk [vmem:[%s204 + $0x50] sm:$0xf] %vm2749, %v2705
        %2771 = vst.msk [vmem:[%s204 + $0x54] sm:$0xf] %vm2749, %v2706
        %2772 = vst.msk [vmem:[%s204 + $0x58] sm:$0xf] %vm2749, %v2707
        %2773 = vst.msk [vmem:[%s204 + $0x5c] sm:$0xf] %vm2749, %v2708
        %2774 = vst.msk [vmem:[%s204 + $0x60] sm:$0xf] %vm2749, %v2709
        %2775 = vst.msk [vmem:[%s204 + $0x64] sm:$0xf] %vm2749, %v2710
        %2776 = vst.msk [vmem:[%s204 + $0x68] sm:$0xf] %vm2749, %v2711
        %2777 = vst.msk [vmem:[%s204 + $0x6c] sm:$0xf] %vm2749, %v2712
        %2778 = vst.msk [vmem:[%s204 + $0x70] sm:$0xf] %vm2749, %v2713
        %2779 = vst.msk [vmem:[%s204 + $0x74] sm:$0xf] %vm2749, %v2714
        %2780 = vst.msk [vmem:[%s204 + $0x78] sm:$0xf] %vm2749, %v2715
        %2781 = vst.msk [vmem:[%s204 + $0x7c] sm:$0xf] %vm2749, %v2716
        %s2782 = sand.u32 %s129, 1
        %s2783 = scalar_lea.sflag [#allocation3], %s2782
        %s2784 = sand.u32 %s129, 1
        %s2785 = smul.addr %s2784, 128
        %s2786 = scalar_lea.vmem [#allocation2], %s2785
        // Predicated region
        $region37: #{tpu_custom_call.1} parent=35 // pred_check
          %p2787 = pneg %p139
        $region38: #{tpu_custom_call.1} parent=35 // pred_check_branch
          %2789 = sbr.rel (%p2787) target = $region40
        $region39: #{tpu_custom_call.1} parent=35 // pred_region
          %s2790 = smul.u32 16, %s23
          %s2792 = ssub.s32 2048, 2048
          %2793 = vsyncadd %s2783, %s2792
          %s2794 = smul.addr %s2790, 2
          %s2795 = smul.addr %s22, 32
          %s2796 = sadd.s32 %s2794, %s2795
          %s2797 = smul.addr %s2796, 64
          %s2798 = scalar_lea.hbm %s4, %s2797
          %s2799 = sshll.u32 %s2786, 4
          %s2800 = int_to_ptr.vmem [resolvable:$true] %s2799
          %2805 = dma.vmem_to_hbm [thread:$0]  %s2800, 2048, %s2798, %s2783, 64, 64, 4
        $region40: #{tpu_custom_call.1} parent=35 // pred_fallthru
          _
      $region36: #{tpu_custom_call.1} parent=5 // pred_fallthru
        _
      %p2806 = scmp.le.s32.totalorder 2, %s13
      // Predicated region
      $region41: #{tpu_custom_call.1} parent=5 // pred_check
        %p2807 = pneg %p2806
      $region42: #{tpu_custom_call.1} parent=5 // pred_check_branch
        %2809 = sbr.rel (%p2807) target = $region44
      $region43: #{tpu_custom_call.1} parent=5 // pred_region
        %s2810 = ssub.s32 %s13, 2
        // Predicated region
        $region45: #{tpu_custom_call.1} parent=43 // pred_check
          %p2811 = pneg %p145
        $region46: #{tpu_custom_call.1} parent=43 // pred_check_branch
          %2813 = sbr.rel (%p2811) target = $region48
        $region47: #{tpu_custom_call.1} parent=43 // pred_region
          %s2814 = sand.u32 %s130, 1
          %s2815 = scalar_lea.sflag [#allocation3], %s2814
          %s2816 = sand.u32 %s130, 1
          %s2817 = smul.addr %s2816, 128
          %s2818 = scalar_lea.vmem [#allocation2], %s2817
          %2819 = dma.done %s2815, 2048
        $region48: #{tpu_custom_call.1} parent=43 // pred_fallthru
          _
      $region44: #{tpu_custom_call.1} parent=5 // pred_fallthru
        _
    $region6: #{tpu_custom_call.1} parent=1 // loop_footer
      %s17 = sadd.s32 1, %s13
    $region7: #{tpu_custom_call.1} parent=1 // loop_footer_branch
      %12 = sbr.rel target = $region3
    $region8: #{tpu_custom_call.1} parent=1 // loop_exit
      _
    %2820 = vsyncpa [#allocation3], 1
    %s2821 = scalar_lea.sflag [#allocation3], 1
    %2822 = vsyncpa %s2821, 1

</llo_original>
